<compile_context>
chip_gen: v5e
topology: v5e:2x2
jax: 0.10.0
libtpu: 0.0.40
codegen_flags: <defaults>
</compile_context>

<pallas_src>
import functools

import jax
import jax.numpy as jnp
import numpy as np
from jax.experimental import pallas as pl
from jax.experimental.pallas import tpu as pltpu


# -----------------------------------------------------------------------------
# Pallas kernel
# -----------------------------------------------------------------------------
def lstm_dynamics_kernel(
    x_ref,                        # (T, BT, Din)  time-major batch tile
    wih0_ref, whh0_ref, b0_ref,   # layer 0: (Din, 4H), (H, 4H), (1, 4H)
    w1_ref, b1_ref,               # layer 1 fused [wih1; whh1]: (2H, 4H), (1, 4H)
    w2_ref, b2_ref,               # layer 2 fused [wih2; whh2]: (2H, 4H), (1, 4H)
    wfc_ref, bfc_ref,             # fc: (H, S), (1, S)
    out_ref,                      # (BT, S)
    xproj_ref,                    # VMEM scratch (T*BT, 4H)
    *, T, B, H,
):
    G = 4 * H

    # ---- off-the-serial-path work ------------------------------------------
    # Layer-0 input projection for every timestep in one lane-dense matmul,
    # bias folded in, written to VMEM scratch (keeps vreg pressure low across
    # the unrolled recurrence).
    x_flat = x_ref[...].reshape(T * B, x_ref.shape[-1])
    xproj_ref[...] = (
        jnp.dot(x_flat, wih0_ref[...], preferred_element_type=jnp.float32)
        + b0_ref[...]
    )

    # Hoist weight loads and bias broadcasts out of the unrolled time loop
    # (JAX does not CSE broadcast_in_dim).
    whh0 = whh0_ref[...]
    w1 = w1_ref[...]
    w2 = w2_ref[...]
    b1 = jnp.broadcast_to(b1_ref[...], (B, G))
    b2 = jnp.broadcast_to(b2_ref[...], (B, G))

    def cell(pre, c_prev):
        # pre: (B, 4H) fused pre-activations, gate order i, f, o, g.
        # Full-vreg EUP passes; slice gates only for the elementwise combine.
        sig = jax.nn.sigmoid(pre)
        tg = jnp.tanh(pre)
        i_g = sig[:, :H]
        f_g = sig[:, H:2 * H]
        o_g = sig[:, 2 * H:3 * H]
        g_g = tg[:, 3 * H:]
        c_new = f_g * c_prev + i_g * g_g
        h_new = o_g * jnp.tanh(c_new)
        return h_new, c_new

    zeros = jnp.zeros((B, H), jnp.float32)
    h0, c0, h1, c1, h2, c2 = zeros, zeros, zeros, zeros, zeros, zeros

    # Fully unrolled recurrence (T static, small): state stays in vregs.
    for t in range(T):
        # layer 0 — precomputed x-projection; only the recurrent dot is on the
        # serial chain.
        pre0 = xproj_ref[t * B:(t + 1) * B, :] + jnp.dot(
            h0, whh0, preferred_element_type=jnp.float32)
        h0, c0 = cell(pre0, c0)

        # layer 1 — input + recurrent contributions in a single MXU dispatch
        # against the fused (2H, 4H) weight.
        pre1 = jnp.dot(jnp.concatenate([h0, h1], axis=-1), w1,
                       preferred_element_type=jnp.float32) + b1
        h1, c1 = cell(pre1, c1)

        # layer 2
        pre2 = jnp.dot(jnp.concatenate([h1, h2], axis=-1), w2,
                       preferred_element_type=jnp.float32) + b2
        h2, c2 = cell(pre2, c2)

    # fc on the last-timestep output of the top layer.
    # TODO(synk): pad S to a lane-dense width if state_size / batch tile grow;
    # the (BT, 4) store is a masked vst today but negligible.
    out_ref[...] = (
        jnp.dot(h2, wfc_ref[...], preferred_element_type=jnp.float32)
        + bfc_ref[...]
    )


# -----------------------------------------------------------------------------
# Wrapper
# -----------------------------------------------------------------------------
def lstm_dynamics_forward(x, params, *, max_batch_tile=128):
    """x: (B, T, Din) float32 ; returns (B, state_size) float32."""
    B, T, Din = x.shape
    H = params["whh0"].shape[0]
    S = params["wfc"].shape[-1]
    G = 4 * H

    # Batch tile: at least 8 (fill sublanes / MXU rows), at most max_batch_tile.
    # Batch rows are independent, so a leading "parallel" grid axis over tiles
    # fills the MXU for big batches and shards across both TCs on v7x.
    BT = min(max_batch_tile, max(8, -(-B // 8) * 8))
    B_pad = -(-B // BT) * BT
    if B_pad != B:
        x = jnp.pad(x, ((0, B_pad - B), (0, 0), (0, 0)))
    n_tiles = B_pad // BT

    x_tb = jnp.transpose(x, (1, 0, 2))  # time-major (T, B_pad, Din)

    def full_spec(shape):
        return pl.BlockSpec(shape, lambda i: (0,) * len(shape))

    kernel = functools.partial(lstm_dynamics_kernel, T=T, B=BT, H=H)

    out = pl.pallas_call(
        kernel,
        out_shape=jax.ShapeDtypeStruct((B_pad, S), jnp.float32),
        grid=(n_tiles,),
        in_specs=[
            pl.BlockSpec((T, BT, Din), lambda i: (0, i, 0)),   # x batch tile
            full_spec((Din, G)), full_spec((H, G)), full_spec((1, G)),
            full_spec((2 * H, G)), full_spec((1, G)),
            full_spec((2 * H, G)), full_spec((1, G)),
            full_spec((H, S)), full_spec((1, S)),
        ],
        out_specs=pl.BlockSpec((BT, S), lambda i: (i, 0)),
        scratch_shapes=[pltpu.VMEM((T * BT, G), jnp.float32)],
        compiler_params=pltpu.CompilerParams(
            dimension_semantics=("parallel",)),
    )(
        x_tb,
        params["wih0"], params["whh0"], params["b0"],
        params["w1"], params["b1"],
        params["w2"], params["b2"],
        params["wfc"], params["bfc"],
    )
    return out[:B]


# -----------------------------------------------------------------------------
# Raw PyTorch-format parameter init (nn.LSTM / nn.Linear shapes, U(-k, k),
# gate order i, f, g, o) and packing into the kernel layout (gate order
# i, f, o, g; fused [wih; whh] for layers 1 and 2).
# -----------------------------------------------------------------------------
def init_raw_params(key, state_size, action_size, hidden_size):
    Din = state_size + action_size
    H = hidden_size
    k = 1.0 / np.sqrt(H)

    def uni(key, shape):
        return jax.random.uniform(key, shape, jnp.float32, minval=-k, maxval=k)

    keys = jax.random.split(key, 14)
    raw = {}
    layer_in = [Din, H, H]
    ki = 0
    for l in range(3):
        in_dim = layer_in[l]
        raw[f"weight_ih_l{l}"] = uni(keys[ki], (4 * H, in_dim)); ki += 1
        raw[f"weight_hh_l{l}"] = uni(keys[ki], (4 * H, H)); ki += 1
        raw[f"bias_ih_l{l}"] = uni(keys[ki], (4 * H,)); ki += 1
        raw[f"bias_hh_l{l}"] = uni(keys[ki], (4 * H,)); ki += 1
    raw["fc_weight"] = uni(keys[ki], (state_size, H)); ki += 1
    raw["fc_bias"] = uni(keys[ki], (state_size,)); ki += 1
    return raw


def _pack_w(w_pt, H):
    """PyTorch (4H, in_dim), gate order i,f,g,o  ->  (in_dim, 4H), order i,f,o,g."""
    in_dim = w_pt.shape[1]
    w4 = w_pt.reshape(4, H, in_dim)[jnp.array([0, 1, 3, 2])]
    return jnp.transpose(w4, (2, 0, 1)).reshape(in_dim, 4 * H)


def _pack_b(b_ih, b_hh, H):
    b = (b_ih + b_hh).reshape(4, H)[jnp.array([0, 1, 3, 2])]
    return b.reshape(1, 4 * H)


def pack_params(raw, hidden_size):
    H = hidden_size
    p = {}
    p["wih0"] = _pack_w(raw["weight_ih_l0"], H)                 # (Din, 4H)
    p["whh0"] = _pack_w(raw["weight_hh_l0"], H)                 # (H, 4H)
    p["b0"] = _pack_b(raw["bias_ih_l0"], raw["bias_hh_l0"], H)  # (1, 4H)
    for l in (1, 2):
        wih = _pack_w(raw[f"weight_ih_l{l}"], H)                # (H, 4H)
        whh = _pack_w(raw[f"weight_hh_l{l}"], H)                # (H, 4H)
        p[f"w{l}"] = jnp.concatenate([wih, whh], axis=0)        # (2H, 4H)
        p[f"b{l}"] = _pack_b(raw[f"bias_ih_l{l}"], raw[f"bias_hh_l{l}"], H)
    p["wfc"] = jnp.transpose(raw["fc_weight"])                  # (H, S)
    p["bfc"] = raw["fc_bias"].reshape(1, -1)                    # (1, S)
    return p


# -----------------------------------------------------------------------------
# Pure-JAX reference in PyTorch layout & gate order (i, f, g, o) — independent
# of the kernel's re-packed weights, so packing bugs are caught.
# -----------------------------------------------------------------------------
def reference_forward_pytorch(x, raw):
    B, T, Din = x.shape
    H = raw["weight_hh_l0"].shape[1]
    h = [jnp.zeros((B, H), jnp.float32) for _ in range(3)]
    c = [jnp.zeros((B, H), jnp.float32) for _ in range(3)]
    for t in range(T):
        inp = x[:, t, :]
        for l in range(3):
            w_ih = raw[f"weight_ih_l{l}"]
            w_hh = raw[f"weight_hh_l{l}"]
            bias = raw[f"bias_ih_l{l}"] + raw[f"bias_hh_l{l}"]
            pre = inp @ w_ih.T + h[l] @ w_hh.T + bias            # (B, 4H) i|f|g|o
            i_g = jax.nn.sigmoid(pre[:, 0 * H:1 * H])
            f_g = jax.nn.sigmoid(pre[:, 1 * H:2 * H])
            g_g = jnp.tanh(pre[:, 2 * H:3 * H])
            o_g = jax.nn.sigmoid(pre[:, 3 * H:4 * H])
            c[l] = f_g * c[l] + i_g * g_g
            h[l] = o_g * jnp.tanh(c[l])
            inp = h[l]
    return h[2] @ raw["fc_weight"].T + raw["fc_bias"]


if __name__ == "__main__":
    state_size = 4
    action_size = 4
    hidden_size = 32
    batch = 2
    seq = 8

    key = jax.random.PRNGKey(0)
    pkey, xkey = jax.random.split(key)
    raw = init_raw_params(pkey, state_size, action_size, hidden_size)
    params = pack_params(raw, hidden_size)

    x = jax.random.normal(
        xkey, (batch, seq, state_size + action_size), jnp.float32
    )

    out = lstm_dynamics_forward(x, params)
    out = jax.block_until_ready(out)

    ref = reference_forward_pytorch(x, raw)
    assert out.shape == (batch, state_size)
    assert jnp.allclose(out, ref, atol=1e-5, rtol=1e-5), (
        f"mismatch: {np.max(np.abs(np.asarray(out) - np.asarray(ref)))}"
    )
    print("KERNEL_OK")
</pallas_src>

<mosaic_0001>
module attributes {stable_mosaic.version = 11 : i64} {
  func.func @lstm_dynamics_kernel(%arg0: i32, %arg1: memref<8x8x8xf32, #tpu.memory_space<vmem>>, %arg2: memref<8x128xf32, #tpu.memory_space<vmem>>, %arg3: memref<32x128xf32, #tpu.memory_space<vmem>>, %arg4: memref<1x128xf32, #tpu.memory_space<vmem>>, %arg5: memref<64x128xf32, #tpu.memory_space<vmem>>, %arg6: memref<1x128xf32, #tpu.memory_space<vmem>>, %arg7: memref<64x128xf32, #tpu.memory_space<vmem>>, %arg8: memref<1x128xf32, #tpu.memory_space<vmem>>, %arg9: memref<32x4xf32, #tpu.memory_space<vmem>>, %arg10: memref<1x4xf32, #tpu.memory_space<vmem>>, %arg11: memref<8x4xf32, #tpu.memory_space<vmem>>, %arg12: memref<64x128xf32, #tpu.memory_space<vmem>>) attributes {dimension_semantics = [#tpu.dimension_semantics<parallel>], iteration_bounds = array<i64: 1>, scalar_prefetch = 0 : i64, scratch_operands = 1 : i64, tpu.core_type = #tpu.core_type<tc>, window_params = [{transform_indices = @transform_0, window_bounds = array<i64: 8, 8, 8>}, {pipeline_mode = #tpu.pipeline_mode<synchronous>, transform_indices = @transform_1, window_bounds = array<i64: 8, 128>}, {pipeline_mode = #tpu.pipeline_mode<synchronous>, transform_indices = @transform_2, window_bounds = array<i64: 32, 128>}, {pipeline_mode = #tpu.pipeline_mode<synchronous>, transform_indices = @transform_3, window_bounds = array<i64: 1, 128>}, {pipeline_mode = #tpu.pipeline_mode<synchronous>, transform_indices = @transform_4, window_bounds = array<i64: 64, 128>}, {pipeline_mode = #tpu.pipeline_mode<synchronous>, transform_indices = @transform_5, window_bounds = array<i64: 1, 128>}, {pipeline_mode = #tpu.pipeline_mode<synchronous>, transform_indices = @transform_6, window_bounds = array<i64: 64, 128>}, {pipeline_mode = #tpu.pipeline_mode<synchronous>, transform_indices = @transform_7, window_bounds = array<i64: 1, 128>}, {pipeline_mode = #tpu.pipeline_mode<synchronous>, transform_indices = @transform_8, window_bounds = array<i64: 32, 4>}, {pipeline_mode = #tpu.pipeline_mode<synchronous>, transform_indices = @transform_9, window_bounds = array<i64: 1, 4>}, {transform_indices = @transform_10, window_bounds = array<i64: 8, 4>}]} {
    %c0 = arith.constant 0 : index
    %c0_0 = arith.constant 0 : index
    %c0_1 = arith.constant 0 : index
    %0 = vector.load %arg1[%c0, %c0_0, %c0_1] : memref<8x8x8xf32, #tpu.memory_space<vmem>>, vector<8x8x8xf32>
    %1 = vector.shape_cast %0 : vector<8x8x8xf32> to vector<64x8xf32>
    %c0_2 = arith.constant 0 : index
    %c0_3 = arith.constant 0 : index
    %2 = vector.load %arg2[%c0_2, %c0_3] : memref<8x128xf32, #tpu.memory_space<vmem>>, vector<8x128xf32>
    %cst = arith.constant dense<0.000000e+00> : vector<64x128xf32>
    %3 = tpu.matmul %1, %2, %cst {dimension_numbers = #tpu.dot_dimension_numbers<[1], [0], [0], [1], [0, 0, 1, 1], [], []>} : vector<64x8xf32>, vector<8x128xf32>, vector<64x128xf32> -> vector<64x128xf32>
    %c0_4 = arith.constant 0 : index
    %c0_5 = arith.constant 0 : index
    %4 = vector.load %arg4[%c0_4, %c0_5] : memref<1x128xf32, #tpu.memory_space<vmem>>, vector<1x128xf32>
    %5 = vector.broadcast %4 : vector<1x128xf32> to vector<64x128xf32>
    %6 = arith.addf %3, %5 : vector<64x128xf32>
    %c0_6 = arith.constant 0 : index
    %c0_7 = arith.constant 0 : index
    %7 = vector.load %arg12[%c0_6, %c0_7] : memref<64x128xf32, #tpu.memory_space<vmem>>, vector<64x128xf32>
    tpu.vector_store %arg12[%c0_6, %c0_7], %6 {strides = array<i32>} : memref<64x128xf32, #tpu.memory_space<vmem>>, vector<64x128xf32>,
    %c0_8 = arith.constant 0 : index
    %c0_9 = arith.constant 0 : index
    %8 = vector.load %arg3[%c0_8, %c0_9] : memref<32x128xf32, #tpu.memory_space<vmem>>, vector<32x128xf32>
    %c0_10 = arith.constant 0 : index
    %c0_11 = arith.constant 0 : index
    %9 = vector.load %arg5[%c0_10, %c0_11] : memref<64x128xf32, #tpu.memory_space<vmem>>, vector<64x128xf32>
    %c0_12 = arith.constant 0 : index
    %c0_13 = arith.constant 0 : index
    %10 = vector.load %arg7[%c0_12, %c0_13] : memref<64x128xf32, #tpu.memory_space<vmem>>, vector<64x128xf32>
    %c0_14 = arith.constant 0 : index
    %c0_15 = arith.constant 0 : index
    %11 = vector.load %arg6[%c0_14, %c0_15] : memref<1x128xf32, #tpu.memory_space<vmem>>, vector<1x128xf32>
    %12 = vector.shape_cast %11 : vector<1x128xf32> to vector<1x128xf32>
    %13 = vector.broadcast %12 : vector<1x128xf32> to vector<8x128xf32>
    %c0_16 = arith.constant 0 : index
    %c0_17 = arith.constant 0 : index
    %14 = vector.load %arg8[%c0_16, %c0_17] : memref<1x128xf32, #tpu.memory_space<vmem>>, vector<1x128xf32>
    %15 = vector.shape_cast %14 : vector<1x128xf32> to vector<1x128xf32>
    %16 = vector.broadcast %15 : vector<1x128xf32> to vector<8x128xf32>
    %cst_18 = arith.constant 0.000000e+00 : f32
    %17 = vector.broadcast %cst_18 : f32 to vector<8x32xf32>
    %c0_19 = arith.constant 0 : index
    %c0_20 = arith.constant 0 : index
    %18 = vector.load %arg12[%c0_19, %c0_20] : memref<64x128xf32, #tpu.memory_space<vmem>>, vector<8x128xf32>
    %cst_21 = arith.constant dense<0.000000e+00> : vector<8x128xf32>
    %19 = tpu.matmul %17, %8, %cst_21 {dimension_numbers = #tpu.dot_dimension_numbers<[1], [0], [0], [1], [0, 0, 1, 1], [], []>} : vector<8x32xf32>, vector<32x128xf32>, vector<8x128xf32> -> vector<8x128xf32>
    %20 = arith.addf %18, %19 : vector<8x128xf32>
    %21 = arith.negf %20 : vector<8x128xf32>
    %22 = math.exp %21 : vector<8x128xf32>
    %cst_22 = arith.constant 1.000000e+00 : f32
    %23 = vector.broadcast %cst_22 : f32 to vector<8x128xf32>
    %24 = arith.addf %23, %22 : vector<8x128xf32>
    %25 = arith.divf %23, %24 : vector<8x128xf32>
    %26 = math.tanh %20 : vector<8x128xf32>
    %27 = vector.extract_strided_slice %25 {offsets = [0, 0], sizes = [8, 32], strides = [1, 1]} : vector<8x128xf32> to vector<8x32xf32>
    %28 = vector.extract_strided_slice %25 {offsets = [0, 32], sizes = [8, 32], strides = [1, 1]} : vector<8x128xf32> to vector<8x32xf32>
    %29 = vector.extract_strided_slice %25 {offsets = [0, 64], sizes = [8, 32], strides = [1, 1]} : vector<8x128xf32> to vector<8x32xf32>
    %30 = vector.extract_strided_slice %26 {offsets = [0, 96], sizes = [8, 32], strides = [1, 1]} : vector<8x128xf32> to vector<8x32xf32>
    %31 = arith.mulf %28, %17 : vector<8x32xf32>
    %32 = arith.mulf %27, %30 : vector<8x32xf32>
    %33 = arith.addf %31, %32 : vector<8x32xf32>
    %34 = math.tanh %33 : vector<8x32xf32>
    %35 = arith.mulf %29, %34 : vector<8x32xf32>
    %36 = tpu.concatenate %35, %17 in 1 : vector<8x32xf32>, vector<8x32xf32> -> vector<8x64xf32>
    %cst_23 = arith.constant dense<0.000000e+00> : vector<8x128xf32>
    %37 = tpu.matmul %36, %9, %cst_23 {dimension_numbers = #tpu.dot_dimension_numbers<[1], [0], [0], [1], [0, 0, 1, 1], [], []>} : vector<8x64xf32>, vector<64x128xf32>, vector<8x128xf32> -> vector<8x128xf32>
    %38 = arith.addf %37, %13 : vector<8x128xf32>
    %39 = arith.negf %38 : vector<8x128xf32>
    %40 = math.exp %39 : vector<8x128xf32>
    %cst_24 = arith.constant 1.000000e+00 : f32
    %41 = vector.broadcast %cst_24 : f32 to vector<8x128xf32>
    %42 = arith.addf %41, %40 : vector<8x128xf32>
    %43 = arith.divf %41, %42 : vector<8x128xf32>
    %44 = math.tanh %38 : vector<8x128xf32>
    %45 = vector.extract_strided_slice %43 {offsets = [0, 0], sizes = [8, 32], strides = [1, 1]} : vector<8x128xf32> to vector<8x32xf32>
    %46 = vector.extract_strided_slice %43 {offsets = [0, 32], sizes = [8, 32], strides = [1, 1]} : vector<8x128xf32> to vector<8x32xf32>
    %47 = vector.extract_strided_slice %43 {offsets = [0, 64], sizes = [8, 32], strides = [1, 1]} : vector<8x128xf32> to vector<8x32xf32>
    %48 = vector.extract_strided_slice %44 {offsets = [0, 96], sizes = [8, 32], strides = [1, 1]} : vector<8x128xf32> to vector<8x32xf32>
    %49 = arith.mulf %46, %17 : vector<8x32xf32>
    %50 = arith.mulf %45, %48 : vector<8x32xf32>
    %51 = arith.addf %49, %50 : vector<8x32xf32>
    %52 = math.tanh %51 : vector<8x32xf32>
    %53 = arith.mulf %47, %52 : vector<8x32xf32>
    %54 = tpu.concatenate %53, %17 in 1 : vector<8x32xf32>, vector<8x32xf32> -> vector<8x64xf32>
    %cst_25 = arith.constant dense<0.000000e+00> : vector<8x128xf32>
    %55 = tpu.matmul %54, %10, %cst_25 {dimension_numbers = #tpu.dot_dimension_numbers<[1], [0], [0], [1], [0, 0, 1, 1], [], []>} : vector<8x64xf32>, vector<64x128xf32>, vector<8x128xf32> -> vector<8x128xf32>
    %56 = arith.addf %55, %16 : vector<8x128xf32>
    %57 = arith.negf %56 : vector<8x128xf32>
    %58 = math.exp %57 : vector<8x128xf32>
    %cst_26 = arith.constant 1.000000e+00 : f32
    %59 = vector.broadcast %cst_26 : f32 to vector<8x128xf32>
    %60 = arith.addf %59, %58 : vector<8x128xf32>
    %61 = arith.divf %59, %60 : vector<8x128xf32>
    %62 = math.tanh %56 : vector<8x128xf32>
    %63 = vector.extract_strided_slice %61 {offsets = [0, 0], sizes = [8, 32], strides = [1, 1]} : vector<8x128xf32> to vector<8x32xf32>
    %64 = vector.extract_strided_slice %61 {offsets = [0, 32], sizes = [8, 32], strides = [1, 1]} : vector<8x128xf32> to vector<8x32xf32>
    %65 = vector.extract_strided_slice %61 {offsets = [0, 64], sizes = [8, 32], strides = [1, 1]} : vector<8x128xf32> to vector<8x32xf32>
    %66 = vector.extract_strided_slice %62 {offsets = [0, 96], sizes = [8, 32], strides = [1, 1]} : vector<8x128xf32> to vector<8x32xf32>
    %67 = arith.mulf %64, %17 : vector<8x32xf32>
    %68 = arith.mulf %63, %66 : vector<8x32xf32>
    %69 = arith.addf %67, %68 : vector<8x32xf32>
    %70 = math.tanh %69 : vector<8x32xf32>
    %71 = arith.mulf %65, %70 : vector<8x32xf32>
    %c8 = arith.constant 8 : index
    %c0_27 = arith.constant 0 : index
    %72 = vector.load %arg12[%c8, %c0_27] : memref<64x128xf32, #tpu.memory_space<vmem>>, vector<8x128xf32>
    %cst_28 = arith.constant dense<0.000000e+00> : vector<8x128xf32>
    %73 = tpu.matmul %35, %8, %cst_28 {dimension_numbers = #tpu.dot_dimension_numbers<[1], [0], [0], [1], [0, 0, 1, 1], [], []>} : vector<8x32xf32>, vector<32x128xf32>, vector<8x128xf32> -> vector<8x128xf32>
    %74 = arith.addf %72, %73 : vector<8x128xf32>
    %75 = arith.negf %74 : vector<8x128xf32>
    %76 = math.exp %75 : vector<8x128xf32>
    %cst_29 = arith.constant 1.000000e+00 : f32
    %77 = vector.broadcast %cst_29 : f32 to vector<8x128xf32>
    %78 = arith.addf %77, %76 : vector<8x128xf32>
    %79 = arith.divf %77, %78 : vector<8x128xf32>
    %80 = math.tanh %74 : vector<8x128xf32>
    %81 = vector.extract_strided_slice %79 {offsets = [0, 0], sizes = [8, 32], strides = [1, 1]} : vector<8x128xf32> to vector<8x32xf32>
    %82 = vector.extract_strided_slice %79 {offsets = [0, 32], sizes = [8, 32], strides = [1, 1]} : vector<8x128xf32> to vector<8x32xf32>
    %83 = vector.extract_strided_slice %79 {offsets = [0, 64], sizes = [8, 32], strides = [1, 1]} : vector<8x128xf32> to vector<8x32xf32>
    %84 = vector.extract_strided_slice %80 {offsets = [0, 96], sizes = [8, 32], strides = [1, 1]} : vector<8x128xf32> to vector<8x32xf32>
    %85 = arith.mulf %82, %33 : vector<8x32xf32>
    %86 = arith.mulf %81, %84 : vector<8x32xf32>
    %87 = arith.addf %85, %86 : vector<8x32xf32>
    %88 = math.tanh %87 : vector<8x32xf32>
    %89 = arith.mulf %83, %88 : vector<8x32xf32>
    %90 = tpu.concatenate %89, %53 in 1 : vector<8x32xf32>, vector<8x32xf32> -> vector<8x64xf32>
    %cst_30 = arith.constant dense<0.000000e+00> : vector<8x128xf32>
    %91 = tpu.matmul %90, %9, %cst_30 {dimension_numbers = #tpu.dot_dimension_numbers<[1], [0], [0], [1], [0, 0, 1, 1], [], []>} : vector<8x64xf32>, vector<64x128xf32>, vector<8x128xf32> -> vector<8x128xf32>
    %92 = arith.addf %91, %13 : vector<8x128xf32>
    %93 = arith.negf %92 : vector<8x128xf32>
    %94 = math.exp %93 : vector<8x128xf32>
    %cst_31 = arith.constant 1.000000e+00 : f32
    %95 = vector.broadcast %cst_31 : f32 to vector<8x128xf32>
    %96 = arith.addf %95, %94 : vector<8x128xf32>
    %97 = arith.divf %95, %96 : vector<8x128xf32>
    %98 = math.tanh %92 : vector<8x128xf32>
    %99 = vector.extract_strided_slice %97 {offsets = [0, 0], sizes = [8, 32], strides = [1, 1]} : vector<8x128xf32> to vector<8x32xf32>
    %100 = vector.extract_strided_slice %97 {offsets = [0, 32], sizes = [8, 32], strides = [1, 1]} : vector<8x128xf32> to vector<8x32xf32>
    %101 = vector.extract_strided_slice %97 {offsets = [0, 64], sizes = [8, 32], strides = [1, 1]} : vector<8x128xf32> to vector<8x32xf32>
    %102 = vector.extract_strided_slice %98 {offsets = [0, 96], sizes = [8, 32], strides = [1, 1]} : vector<8x128xf32> to vector<8x32xf32>
    %103 = arith.mulf %100, %51 : vector<8x32xf32>
    %104 = arith.mulf %99, %102 : vector<8x32xf32>
    %105 = arith.addf %103, %104 : vector<8x32xf32>
    %106 = math.tanh %105 : vector<8x32xf32>
    %107 = arith.mulf %101, %106 : vector<8x32xf32>
    %108 = tpu.concatenate %107, %71 in 1 : vector<8x32xf32>, vector<8x32xf32> -> vector<8x64xf32>
    %cst_32 = arith.constant dense<0.000000e+00> : vector<8x128xf32>
    %109 = tpu.matmul %108, %10, %cst_32 {dimension_numbers = #tpu.dot_dimension_numbers<[1], [0], [0], [1], [0, 0, 1, 1], [], []>} : vector<8x64xf32>, vector<64x128xf32>, vector<8x128xf32> -> vector<8x128xf32>
    %110 = arith.addf %109, %16 : vector<8x128xf32>
    %111 = arith.negf %110 : vector<8x128xf32>
    %112 = math.exp %111 : vector<8x128xf32>
    %cst_33 = arith.constant 1.000000e+00 : f32
    %113 = vector.broadcast %cst_33 : f32 to vector<8x128xf32>
    %114 = arith.addf %113, %112 : vector<8x128xf32>
    %115 = arith.divf %113, %114 : vector<8x128xf32>
    %116 = math.tanh %110 : vector<8x128xf32>
    %117 = vector.extract_strided_slice %115 {offsets = [0, 0], sizes = [8, 32], strides = [1, 1]} : vector<8x128xf32> to vector<8x32xf32>
    %118 = vector.extract_strided_slice %115 {offsets = [0, 32], sizes = [8, 32], strides = [1, 1]} : vector<8x128xf32> to vector<8x32xf32>
    %119 = vector.extract_strided_slice %115 {offsets = [0, 64], sizes = [8, 32], strides = [1, 1]} : vector<8x128xf32> to vector<8x32xf32>
    %120 = vector.extract_strided_slice %116 {offsets = [0, 96], sizes = [8, 32], strides = [1, 1]} : vector<8x128xf32> to vector<8x32xf32>
    %121 = arith.mulf %118, %69 : vector<8x32xf32>
    %122 = arith.mulf %117, %120 : vector<8x32xf32>
    %123 = arith.addf %121, %122 : vector<8x32xf32>
    %124 = math.tanh %123 : vector<8x32xf32>
    %125 = arith.mulf %119, %124 : vector<8x32xf32>
    %c16 = arith.constant 16 : index
    %c0_34 = arith.constant 0 : index
    %126 = vector.load %arg12[%c16, %c0_34] : memref<64x128xf32, #tpu.memory_space<vmem>>, vector<8x128xf32>
    %cst_35 = arith.constant dense<0.000000e+00> : vector<8x128xf32>
    %127 = tpu.matmul %89, %8, %cst_35 {dimension_numbers = #tpu.dot_dimension_numbers<[1], [0], [0], [1], [0, 0, 1, 1], [], []>} : vector<8x32xf32>, vector<32x128xf32>, vector<8x128xf32> -> vector<8x128xf32>
    %128 = arith.addf %126, %127 : vector<8x128xf32>
    %129 = arith.negf %128 : vector<8x128xf32>
    %130 = math.exp %129 : vector<8x128xf32>
    %cst_36 = arith.constant 1.000000e+00 : f32
    %131 = vector.broadcast %cst_36 : f32 to vector<8x128xf32>
    %132 = arith.addf %131, %130 : vector<8x128xf32>
    %133 = arith.divf %131, %132 : vector<8x128xf32>
    %134 = math.tanh %128 : vector<8x128xf32>
    %135 = vector.extract_strided_slice %133 {offsets = [0, 0], sizes = [8, 32], strides = [1, 1]} : vector<8x128xf32> to vector<8x32xf32>
    %136 = vector.extract_strided_slice %133 {offsets = [0, 32], sizes = [8, 32], strides = [1, 1]} : vector<8x128xf32> to vector<8x32xf32>
    %137 = vector.extract_strided_slice %133 {offsets = [0, 64], sizes = [8, 32], strides = [1, 1]} : vector<8x128xf32> to vector<8x32xf32>
    %138 = vector.extract_strided_slice %134 {offsets = [0, 96], sizes = [8, 32], strides = [1, 1]} : vector<8x128xf32> to vector<8x32xf32>
    %139 = arith.mulf %136, %87 : vector<8x32xf32>
    %140 = arith.mulf %135, %138 : vector<8x32xf32>
    %141 = arith.addf %139, %140 : vector<8x32xf32>
    %142 = math.tanh %141 : vector<8x32xf32>
    %143 = arith.mulf %137, %142 : vector<8x32xf32>
    %144 = tpu.concatenate %143, %107 in 1 : vector<8x32xf32>, vector<8x32xf32> -> vector<8x64xf32>
    %cst_37 = arith.constant dense<0.000000e+00> : vector<8x128xf32>
    %145 = tpu.matmul %144, %9, %cst_37 {dimension_numbers = #tpu.dot_dimension_numbers<[1], [0], [0], [1], [0, 0, 1, 1], [], []>} : vector<8x64xf32>, vector<64x128xf32>, vector<8x128xf32> -> vector<8x128xf32>
    %146 = arith.addf %145, %13 : vector<8x128xf32>
    %147 = arith.negf %146 : vector<8x128xf32>
    %148 = math.exp %147 : vector<8x128xf32>
    %cst_38 = arith.constant 1.000000e+00 : f32
    %149 = vector.broadcast %cst_38 : f32 to vector<8x128xf32>
    %150 = arith.addf %149, %148 : vector<8x128xf32>
    %151 = arith.divf %149, %150 : vector<8x128xf32>
    %152 = math.tanh %146 : vector<8x128xf32>
    %153 = vector.extract_strided_slice %151 {offsets = [0, 0], sizes = [8, 32], strides = [1, 1]} : vector<8x128xf32> to vector<8x32xf32>
    %154 = vector.extract_strided_slice %151 {offsets = [0, 32], sizes = [8, 32], strides = [1, 1]} : vector<8x128xf32> to vector<8x32xf32>
    %155 = vector.extract_strided_slice %151 {offsets = [0, 64], sizes = [8, 32], strides = [1, 1]} : vector<8x128xf32> to vector<8x32xf32>
    %156 = vector.extract_strided_slice %152 {offsets = [0, 96], sizes = [8, 32], strides = [1, 1]} : vector<8x128xf32> to vector<8x32xf32>
    %157 = arith.mulf %154, %105 : vector<8x32xf32>
    %158 = arith.mulf %153, %156 : vector<8x32xf32>
    %159 = arith.addf %157, %158 : vector<8x32xf32>
    %160 = math.tanh %159 : vector<8x32xf32>
    %161 = arith.mulf %155, %160 : vector<8x32xf32>
    %162 = tpu.concatenate %161, %125 in 1 : vector<8x32xf32>, vector<8x32xf32> -> vector<8x64xf32>
    %cst_39 = arith.constant dense<0.000000e+00> : vector<8x128xf32>
    %163 = tpu.matmul %162, %10, %cst_39 {dimension_numbers = #tpu.dot_dimension_numbers<[1], [0], [0], [1], [0, 0, 1, 1], [], []>} : vector<8x64xf32>, vector<64x128xf32>, vector<8x128xf32> -> vector<8x128xf32>
    %164 = arith.addf %163, %16 : vector<8x128xf32>
    %165 = arith.negf %164 : vector<8x128xf32>
    %166 = math.exp %165 : vector<8x128xf32>
    %cst_40 = arith.constant 1.000000e+00 : f32
    %167 = vector.broadcast %cst_40 : f32 to vector<8x128xf32>
    %168 = arith.addf %167, %166 : vector<8x128xf32>
    %169 = arith.divf %167, %168 : vector<8x128xf32>
    %170 = math.tanh %164 : vector<8x128xf32>
    %171 = vector.extract_strided_slice %169 {offsets = [0, 0], sizes = [8, 32], strides = [1, 1]} : vector<8x128xf32> to vector<8x32xf32>
    %172 = vector.extract_strided_slice %169 {offsets = [0, 32], sizes = [8, 32], strides = [1, 1]} : vector<8x128xf32> to vector<8x32xf32>
    %173 = vector.extract_strided_slice %169 {offsets = [0, 64], sizes = [8, 32], strides = [1, 1]} : vector<8x128xf32> to vector<8x32xf32>
    %174 = vector.extract_strided_slice %170 {offsets = [0, 96], sizes = [8, 32], strides = [1, 1]} : vector<8x128xf32> to vector<8x32xf32>
    %175 = arith.mulf %172, %123 : vector<8x32xf32>
    %176 = arith.mulf %171, %174 : vector<8x32xf32>
    %177 = arith.addf %175, %176 : vector<8x32xf32>
    %178 = math.tanh %177 : vector<8x32xf32>
    %179 = arith.mulf %173, %178 : vector<8x32xf32>
    %c24 = arith.constant 24 : index
    %c0_41 = arith.constant 0 : index
    %180 = vector.load %arg12[%c24, %c0_41] : memref<64x128xf32, #tpu.memory_space<vmem>>, vector<8x128xf32>
    %cst_42 = arith.constant dense<0.000000e+00> : vector<8x128xf32>
    %181 = tpu.matmul %143, %8, %cst_42 {dimension_numbers = #tpu.dot_dimension_numbers<[1], [0], [0], [1], [0, 0, 1, 1], [], []>} : vector<8x32xf32>, vector<32x128xf32>, vector<8x128xf32> -> vector<8x128xf32>
    %182 = arith.addf %180, %181 : vector<8x128xf32>
    %183 = arith.negf %182 : vector<8x128xf32>
    %184 = math.exp %183 : vector<8x128xf32>
    %cst_43 = arith.constant 1.000000e+00 : f32
    %185 = vector.broadcast %cst_43 : f32 to vector<8x128xf32>
    %186 = arith.addf %185, %184 : vector<8x128xf32>
    %187 = arith.divf %185, %186 : vector<8x128xf32>
    %188 = math.tanh %182 : vector<8x128xf32>
    %189 = vector.extract_strided_slice %187 {offsets = [0, 0], sizes = [8, 32], strides = [1, 1]} : vector<8x128xf32> to vector<8x32xf32>
    %190 = vector.extract_strided_slice %187 {offsets = [0, 32], sizes = [8, 32], strides = [1, 1]} : vector<8x128xf32> to vector<8x32xf32>
    %191 = vector.extract_strided_slice %187 {offsets = [0, 64], sizes = [8, 32], strides = [1, 1]} : vector<8x128xf32> to vector<8x32xf32>
    %192 = vector.extract_strided_slice %188 {offsets = [0, 96], sizes = [8, 32], strides = [1, 1]} : vector<8x128xf32> to vector<8x32xf32>
    %193 = arith.mulf %190, %141 : vector<8x32xf32>
    %194 = arith.mulf %189, %192 : vector<8x32xf32>
    %195 = arith.addf %193, %194 : vector<8x32xf32>
    %196 = math.tanh %195 : vector<8x32xf32>
    %197 = arith.mulf %191, %196 : vector<8x32xf32>
    %198 = tpu.concatenate %197, %161 in 1 : vector<8x32xf32>, vector<8x32xf32> -> vector<8x64xf32>
    %cst_44 = arith.constant dense<0.000000e+00> : vector<8x128xf32>
    %199 = tpu.matmul %198, %9, %cst_44 {dimension_numbers = #tpu.dot_dimension_numbers<[1], [0], [0], [1], [0, 0, 1, 1], [], []>} : vector<8x64xf32>, vector<64x128xf32>, vector<8x128xf32> -> vector<8x128xf32>
    %200 = arith.addf %199, %13 : vector<8x128xf32>
    %201 = arith.negf %200 : vector<8x128xf32>
    %202 = math.exp %201 : vector<8x128xf32>
    %cst_45 = arith.constant 1.000000e+00 : f32
    %203 = vector.broadcast %cst_45 : f32 to vector<8x128xf32>
    %204 = arith.addf %203, %202 : vector<8x128xf32>
    %205 = arith.divf %203, %204 : vector<8x128xf32>
    %206 = math.tanh %200 : vector<8x128xf32>
    %207 = vector.extract_strided_slice %205 {offsets = [0, 0], sizes = [8, 32], strides = [1, 1]} : vector<8x128xf32> to vector<8x32xf32>
    %208 = vector.extract_strided_slice %205 {offsets = [0, 32], sizes = [8, 32], strides = [1, 1]} : vector<8x128xf32> to vector<8x32xf32>
    %209 = vector.extract_strided_slice %205 {offsets = [0, 64], sizes = [8, 32], strides = [1, 1]} : vector<8x128xf32> to vector<8x32xf32>
    %210 = vector.extract_strided_slice %206 {offsets = [0, 96], sizes = [8, 32], strides = [1, 1]} : vector<8x128xf32> to vector<8x32xf32>
    %211 = arith.mulf %208, %159 : vector<8x32xf32>
    %212 = arith.mulf %207, %210 : vector<8x32xf32>
    %213 = arith.addf %211, %212 : vector<8x32xf32>
    %214 = math.tanh %213 : vector<8x32xf32>
    %215 = arith.mulf %209, %214 : vector<8x32xf32>
    %216 = tpu.concatenate %215, %179 in 1 : vector<8x32xf32>, vector<8x32xf32> -> vector<8x64xf32>
    %cst_46 = arith.constant dense<0.000000e+00> : vector<8x128xf32>
    %217 = tpu.matmul %216, %10, %cst_46 {dimension_numbers = #tpu.dot_dimension_numbers<[1], [0], [0], [1], [0, 0, 1, 1], [], []>} : vector<8x64xf32>, vector<64x128xf32>, vector<8x128xf32> -> vector<8x128xf32>
    %218 = arith.addf %217, %16 : vector<8x128xf32>
    %219 = arith.negf %218 : vector<8x128xf32>
    %220 = math.exp %219 : vector<8x128xf32>
    %cst_47 = arith.constant 1.000000e+00 : f32
    %221 = vector.broadcast %cst_47 : f32 to vector<8x128xf32>
    %222 = arith.addf %221, %220 : vector<8x128xf32>
    %223 = arith.divf %221, %222 : vector<8x128xf32>
    %224 = math.tanh %218 : vector<8x128xf32>
    %225 = vector.extract_strided_slice %223 {offsets = [0, 0], sizes = [8, 32], strides = [1, 1]} : vector<8x128xf32> to vector<8x32xf32>
    %226 = vector.extract_strided_slice %223 {offsets = [0, 32], sizes = [8, 32], strides = [1, 1]} : vector<8x128xf32> to vector<8x32xf32>
    %227 = vector.extract_strided_slice %223 {offsets = [0, 64], sizes = [8, 32], strides = [1, 1]} : vector<8x128xf32> to vector<8x32xf32>
    %228 = vector.extract_strided_slice %224 {offsets = [0, 96], sizes = [8, 32], strides = [1, 1]} : vector<8x128xf32> to vector<8x32xf32>
    %229 = arith.mulf %226, %177 : vector<8x32xf32>
    %230 = arith.mulf %225, %228 : vector<8x32xf32>
    %231 = arith.addf %229, %230 : vector<8x32xf32>
    %232 = math.tanh %231 : vector<8x32xf32>
    %233 = arith.mulf %227, %232 : vector<8x32xf32>
    %c32 = arith.constant 32 : index
    %c0_48 = arith.constant 0 : index
    %234 = vector.load %arg12[%c32, %c0_48] : memref<64x128xf32, #tpu.memory_space<vmem>>, vector<8x128xf32>
    %cst_49 = arith.constant dense<0.000000e+00> : vector<8x128xf32>
    %235 = tpu.matmul %197, %8, %cst_49 {dimension_numbers = #tpu.dot_dimension_numbers<[1], [0], [0], [1], [0, 0, 1, 1], [], []>} : vector<8x32xf32>, vector<32x128xf32>, vector<8x128xf32> -> vector<8x128xf32>
    %236 = arith.addf %234, %235 : vector<8x128xf32>
    %237 = arith.negf %236 : vector<8x128xf32>
    %238 = math.exp %237 : vector<8x128xf32>
    %cst_50 = arith.constant 1.000000e+00 : f32
    %239 = vector.broadcast %cst_50 : f32 to vector<8x128xf32>
    %240 = arith.addf %239, %238 : vector<8x128xf32>
    %241 = arith.divf %239, %240 : vector<8x128xf32>
    %242 = math.tanh %236 : vector<8x128xf32>
    %243 = vector.extract_strided_slice %241 {offsets = [0, 0], sizes = [8, 32], strides = [1, 1]} : vector<8x128xf32> to vector<8x32xf32>
    %244 = vector.extract_strided_slice %241 {offsets = [0, 32], sizes = [8, 32], strides = [1, 1]} : vector<8x128xf32> to vector<8x32xf32>
    %245 = vector.extract_strided_slice %241 {offsets = [0, 64], sizes = [8, 32], strides = [1, 1]} : vector<8x128xf32> to vector<8x32xf32>
    %246 = vector.extract_strided_slice %242 {offsets = [0, 96], sizes = [8, 32], strides = [1, 1]} : vector<8x128xf32> to vector<8x32xf32>
    %247 = arith.mulf %244, %195 : vector<8x32xf32>
    %248 = arith.mulf %243, %246 : vector<8x32xf32>
    %249 = arith.addf %247, %248 : vector<8x32xf32>
    %250 = math.tanh %249 : vector<8x32xf32>
    %251 = arith.mulf %245, %250 : vector<8x32xf32>
    %252 = tpu.concatenate %251, %215 in 1 : vector<8x32xf32>, vector<8x32xf32> -> vector<8x64xf32>
    %cst_51 = arith.constant dense<0.000000e+00> : vector<8x128xf32>
    %253 = tpu.matmul %252, %9, %cst_51 {dimension_numbers = #tpu.dot_dimension_numbers<[1], [0], [0], [1], [0, 0, 1, 1], [], []>} : vector<8x64xf32>, vector<64x128xf32>, vector<8x128xf32> -> vector<8x128xf32>
    %254 = arith.addf %253, %13 : vector<8x128xf32>
    %255 = arith.negf %254 : vector<8x128xf32>
    %256 = math.exp %255 : vector<8x128xf32>
    %cst_52 = arith.constant 1.000000e+00 : f32
    %257 = vector.broadcast %cst_52 : f32 to vector<8x128xf32>
    %258 = arith.addf %257, %256 : vector<8x128xf32>
    %259 = arith.divf %257, %258 : vector<8x128xf32>
    %260 = math.tanh %254 : vector<8x128xf32>
    %261 = vector.extract_strided_slice %259 {offsets = [0, 0], sizes = [8, 32], strides = [1, 1]} : vector<8x128xf32> to vector<8x32xf32>
    %262 = vector.extract_strided_slice %259 {offsets = [0, 32], sizes = [8, 32], strides = [1, 1]} : vector<8x128xf32> to vector<8x32xf32>
    %263 = vector.extract_strided_slice %259 {offsets = [0, 64], sizes = [8, 32], strides = [1, 1]} : vector<8x128xf32> to vector<8x32xf32>
    %264 = vector.extract_strided_slice %260 {offsets = [0, 96], sizes = [8, 32], strides = [1, 1]} : vector<8x128xf32> to vector<8x32xf32>
    %265 = arith.mulf %262, %213 : vector<8x32xf32>
    %266 = arith.mulf %261, %264 : vector<8x32xf32>
    %267 = arith.addf %265, %266 : vector<8x32xf32>
    %268 = math.tanh %267 : vector<8x32xf32>
    %269 = arith.mulf %263, %268 : vector<8x32xf32>
    %270 = tpu.concatenate %269, %233 in 1 : vector<8x32xf32>, vector<8x32xf32> -> vector<8x64xf32>
    %cst_53 = arith.constant dense<0.000000e+00> : vector<8x128xf32>
    %271 = tpu.matmul %270, %10, %cst_53 {dimension_numbers = #tpu.dot_dimension_numbers<[1], [0], [0], [1], [0, 0, 1, 1], [], []>} : vector<8x64xf32>, vector<64x128xf32>, vector<8x128xf32> -> vector<8x128xf32>
    %272 = arith.addf %271, %16 : vector<8x128xf32>
    %273 = arith.negf %272 : vector<8x128xf32>
    %274 = math.exp %273 : vector<8x128xf32>
    %cst_54 = arith.constant 1.000000e+00 : f32
    %275 = vector.broadcast %cst_54 : f32 to vector<8x128xf32>
    %276 = arith.addf %275, %274 : vector<8x128xf32>
    %277 = arith.divf %275, %276 : vector<8x128xf32>
    %278 = math.tanh %272 : vector<8x128xf32>
    %279 = vector.extract_strided_slice %277 {offsets = [0, 0], sizes = [8, 32], strides = [1, 1]} : vector<8x128xf32> to vector<8x32xf32>
    %280 = vector.extract_strided_slice %277 {offsets = [0, 32], sizes = [8, 32], strides = [1, 1]} : vector<8x128xf32> to vector<8x32xf32>
    %281 = vector.extract_strided_slice %277 {offsets = [0, 64], sizes = [8, 32], strides = [1, 1]} : vector<8x128xf32> to vector<8x32xf32>
    %282 = vector.extract_strided_slice %278 {offsets = [0, 96], sizes = [8, 32], strides = [1, 1]} : vector<8x128xf32> to vector<8x32xf32>
    %283 = arith.mulf %280, %231 : vector<8x32xf32>
    %284 = arith.mulf %279, %282 : vector<8x32xf32>
    %285 = arith.addf %283, %284 : vector<8x32xf32>
    %286 = math.tanh %285 : vector<8x32xf32>
    %287 = arith.mulf %281, %286 : vector<8x32xf32>
    %c40 = arith.constant 40 : index
    %c0_55 = arith.constant 0 : index
    %288 = vector.load %arg12[%c40, %c0_55] : memref<64x128xf32, #tpu.memory_space<vmem>>, vector<8x128xf32>
    %cst_56 = arith.constant dense<0.000000e+00> : vector<8x128xf32>
    %289 = tpu.matmul %251, %8, %cst_56 {dimension_numbers = #tpu.dot_dimension_numbers<[1], [0], [0], [1], [0, 0, 1, 1], [], []>} : vector<8x32xf32>, vector<32x128xf32>, vector<8x128xf32> -> vector<8x128xf32>
    %290 = arith.addf %288, %289 : vector<8x128xf32>
    %291 = arith.negf %290 : vector<8x128xf32>
    %292 = math.exp %291 : vector<8x128xf32>
    %cst_57 = arith.constant 1.000000e+00 : f32
    %293 = vector.broadcast %cst_57 : f32 to vector<8x128xf32>
    %294 = arith.addf %293, %292 : vector<8x128xf32>
    %295 = arith.divf %293, %294 : vector<8x128xf32>
    %296 = math.tanh %290 : vector<8x128xf32>
    %297 = vector.extract_strided_slice %295 {offsets = [0, 0], sizes = [8, 32], strides = [1, 1]} : vector<8x128xf32> to vector<8x32xf32>
    %298 = vector.extract_strided_slice %295 {offsets = [0, 32], sizes = [8, 32], strides = [1, 1]} : vector<8x128xf32> to vector<8x32xf32>
    %299 = vector.extract_strided_slice %295 {offsets = [0, 64], sizes = [8, 32], strides = [1, 1]} : vector<8x128xf32> to vector<8x32xf32>
    %300 = vector.extract_strided_slice %296 {offsets = [0, 96], sizes = [8, 32], strides = [1, 1]} : vector<8x128xf32> to vector<8x32xf32>
    %301 = arith.mulf %298, %249 : vector<8x32xf32>
    %302 = arith.mulf %297, %300 : vector<8x32xf32>
    %303 = arith.addf %301, %302 : vector<8x32xf32>
    %304 = math.tanh %303 : vector<8x32xf32>
    %305 = arith.mulf %299, %304 : vector<8x32xf32>
    %306 = tpu.concatenate %305, %269 in 1 : vector<8x32xf32>, vector<8x32xf32> -> vector<8x64xf32>
    %cst_58 = arith.constant dense<0.000000e+00> : vector<8x128xf32>
    %307 = tpu.matmul %306, %9, %cst_58 {dimension_numbers = #tpu.dot_dimension_numbers<[1], [0], [0], [1], [0, 0, 1, 1], [], []>} : vector<8x64xf32>, vector<64x128xf32>, vector<8x128xf32> -> vector<8x128xf32>
    %308 = arith.addf %307, %13 : vector<8x128xf32>
    %309 = arith.negf %308 : vector<8x128xf32>
    %310 = math.exp %309 : vector<8x128xf32>
    %cst_59 = arith.constant 1.000000e+00 : f32
    %311 = vector.broadcast %cst_59 : f32 to vector<8x128xf32>
    %312 = arith.addf %311, %310 : vector<8x128xf32>
    %313 = arith.divf %311, %312 : vector<8x128xf32>
    %314 = math.tanh %308 : vector<8x128xf32>
    %315 = vector.extract_strided_slice %313 {offsets = [0, 0], sizes = [8, 32], strides = [1, 1]} : vector<8x128xf32> to vector<8x32xf32>
    %316 = vector.extract_strided_slice %313 {offsets = [0, 32], sizes = [8, 32], strides = [1, 1]} : vector<8x128xf32> to vector<8x32xf32>
    %317 = vector.extract_strided_slice %313 {offsets = [0, 64], sizes = [8, 32], strides = [1, 1]} : vector<8x128xf32> to vector<8x32xf32>
    %318 = vector.extract_strided_slice %314 {offsets = [0, 96], sizes = [8, 32], strides = [1, 1]} : vector<8x128xf32> to vector<8x32xf32>
    %319 = arith.mulf %316, %267 : vector<8x32xf32>
    %320 = arith.mulf %315, %318 : vector<8x32xf32>
    %321 = arith.addf %319, %320 : vector<8x32xf32>
    %322 = math.tanh %321 : vector<8x32xf32>
    %323 = arith.mulf %317, %322 : vector<8x32xf32>
    %324 = tpu.concatenate %323, %287 in 1 : vector<8x32xf32>, vector<8x32xf32> -> vector<8x64xf32>
    %cst_60 = arith.constant dense<0.000000e+00> : vector<8x128xf32>
    %325 = tpu.matmul %324, %10, %cst_60 {dimension_numbers = #tpu.dot_dimension_numbers<[1], [0], [0], [1], [0, 0, 1, 1], [], []>} : vector<8x64xf32>, vector<64x128xf32>, vector<8x128xf32> -> vector<8x128xf32>
    %326 = arith.addf %325, %16 : vector<8x128xf32>
    %327 = arith.negf %326 : vector<8x128xf32>
    %328 = math.exp %327 : vector<8x128xf32>
    %cst_61 = arith.constant 1.000000e+00 : f32
    %329 = vector.broadcast %cst_61 : f32 to vector<8x128xf32>
    %330 = arith.addf %329, %328 : vector<8x128xf32>
    %331 = arith.divf %329, %330 : vector<8x128xf32>
    %332 = math.tanh %326 : vector<8x128xf32>
    %333 = vector.extract_strided_slice %331 {offsets = [0, 0], sizes = [8, 32], strides = [1, 1]} : vector<8x128xf32> to vector<8x32xf32>
    %334 = vector.extract_strided_slice %331 {offsets = [0, 32], sizes = [8, 32], strides = [1, 1]} : vector<8x128xf32> to vector<8x32xf32>
    %335 = vector.extract_strided_slice %331 {offsets = [0, 64], sizes = [8, 32], strides = [1, 1]} : vector<8x128xf32> to vector<8x32xf32>
    %336 = vector.extract_strided_slice %332 {offsets = [0, 96], sizes = [8, 32], strides = [1, 1]} : vector<8x128xf32> to vector<8x32xf32>
    %337 = arith.mulf %334, %285 : vector<8x32xf32>
    %338 = arith.mulf %333, %336 : vector<8x32xf32>
    %339 = arith.addf %337, %338 : vector<8x32xf32>
    %340 = math.tanh %339 : vector<8x32xf32>
    %341 = arith.mulf %335, %340 : vector<8x32xf32>
    %c48 = arith.constant 48 : index
    %c0_62 = arith.constant 0 : index
    %342 = vector.load %arg12[%c48, %c0_62] : memref<64x128xf32, #tpu.memory_space<vmem>>, vector<8x128xf32>
    %cst_63 = arith.constant dense<0.000000e+00> : vector<8x128xf32>
    %343 = tpu.matmul %305, %8, %cst_63 {dimension_numbers = #tpu.dot_dimension_numbers<[1], [0], [0], [1], [0, 0, 1, 1], [], []>} : vector<8x32xf32>, vector<32x128xf32>, vector<8x128xf32> -> vector<8x128xf32>
    %344 = arith.addf %342, %343 : vector<8x128xf32>
    %345 = arith.negf %344 : vector<8x128xf32>
    %346 = math.exp %345 : vector<8x128xf32>
    %cst_64 = arith.constant 1.000000e+00 : f32
    %347 = vector.broadcast %cst_64 : f32 to vector<8x128xf32>
    %348 = arith.addf %347, %346 : vector<8x128xf32>
    %349 = arith.divf %347, %348 : vector<8x128xf32>
    %350 = math.tanh %344 : vector<8x128xf32>
    %351 = vector.extract_strided_slice %349 {offsets = [0, 0], sizes = [8, 32], strides = [1, 1]} : vector<8x128xf32> to vector<8x32xf32>
    %352 = vector.extract_strided_slice %349 {offsets = [0, 32], sizes = [8, 32], strides = [1, 1]} : vector<8x128xf32> to vector<8x32xf32>
    %353 = vector.extract_strided_slice %349 {offsets = [0, 64], sizes = [8, 32], strides = [1, 1]} : vector<8x128xf32> to vector<8x32xf32>
    %354 = vector.extract_strided_slice %350 {offsets = [0, 96], sizes = [8, 32], strides = [1, 1]} : vector<8x128xf32> to vector<8x32xf32>
    %355 = arith.mulf %352, %303 : vector<8x32xf32>
    %356 = arith.mulf %351, %354 : vector<8x32xf32>
    %357 = arith.addf %355, %356 : vector<8x32xf32>
    %358 = math.tanh %357 : vector<8x32xf32>
    %359 = arith.mulf %353, %358 : vector<8x32xf32>
    %360 = tpu.concatenate %359, %323 in 1 : vector<8x32xf32>, vector<8x32xf32> -> vector<8x64xf32>
    %cst_65 = arith.constant dense<0.000000e+00> : vector<8x128xf32>
    %361 = tpu.matmul %360, %9, %cst_65 {dimension_numbers = #tpu.dot_dimension_numbers<[1], [0], [0], [1], [0, 0, 1, 1], [], []>} : vector<8x64xf32>, vector<64x128xf32>, vector<8x128xf32> -> vector<8x128xf32>
    %362 = arith.addf %361, %13 : vector<8x128xf32>
    %363 = arith.negf %362 : vector<8x128xf32>
    %364 = math.exp %363 : vector<8x128xf32>
    %cst_66 = arith.constant 1.000000e+00 : f32
    %365 = vector.broadcast %cst_66 : f32 to vector<8x128xf32>
    %366 = arith.addf %365, %364 : vector<8x128xf32>
    %367 = arith.divf %365, %366 : vector<8x128xf32>
    %368 = math.tanh %362 : vector<8x128xf32>
    %369 = vector.extract_strided_slice %367 {offsets = [0, 0], sizes = [8, 32], strides = [1, 1]} : vector<8x128xf32> to vector<8x32xf32>
    %370 = vector.extract_strided_slice %367 {offsets = [0, 32], sizes = [8, 32], strides = [1, 1]} : vector<8x128xf32> to vector<8x32xf32>
    %371 = vector.extract_strided_slice %367 {offsets = [0, 64], sizes = [8, 32], strides = [1, 1]} : vector<8x128xf32> to vector<8x32xf32>
    %372 = vector.extract_strided_slice %368 {offsets = [0, 96], sizes = [8, 32], strides = [1, 1]} : vector<8x128xf32> to vector<8x32xf32>
    %373 = arith.mulf %370, %321 : vector<8x32xf32>
    %374 = arith.mulf %369, %372 : vector<8x32xf32>
    %375 = arith.addf %373, %374 : vector<8x32xf32>
    %376 = math.tanh %375 : vector<8x32xf32>
    %377 = arith.mulf %371, %376 : vector<8x32xf32>
    %378 = tpu.concatenate %377, %341 in 1 : vector<8x32xf32>, vector<8x32xf32> -> vector<8x64xf32>
    %cst_67 = arith.constant dense<0.000000e+00> : vector<8x128xf32>
    %379 = tpu.matmul %378, %10, %cst_67 {dimension_numbers = #tpu.dot_dimension_numbers<[1], [0], [0], [1], [0, 0, 1, 1], [], []>} : vector<8x64xf32>, vector<64x128xf32>, vector<8x128xf32> -> vector<8x128xf32>
    %380 = arith.addf %379, %16 : vector<8x128xf32>
    %381 = arith.negf %380 : vector<8x128xf32>
    %382 = math.exp %381 : vector<8x128xf32>
    %cst_68 = arith.constant 1.000000e+00 : f32
    %383 = vector.broadcast %cst_68 : f32 to vector<8x128xf32>
    %384 = arith.addf %383, %382 : vector<8x128xf32>
    %385 = arith.divf %383, %384 : vector<8x128xf32>
    %386 = math.tanh %380 : vector<8x128xf32>
    %387 = vector.extract_strided_slice %385 {offsets = [0, 0], sizes = [8, 32], strides = [1, 1]} : vector<8x128xf32> to vector<8x32xf32>
    %388 = vector.extract_strided_slice %385 {offsets = [0, 32], sizes = [8, 32], strides = [1, 1]} : vector<8x128xf32> to vector<8x32xf32>
    %389 = vector.extract_strided_slice %385 {offsets = [0, 64], sizes = [8, 32], strides = [1, 1]} : vector<8x128xf32> to vector<8x32xf32>
    %390 = vector.extract_strided_slice %386 {offsets = [0, 96], sizes = [8, 32], strides = [1, 1]} : vector<8x128xf32> to vector<8x32xf32>
    %391 = arith.mulf %388, %339 : vector<8x32xf32>
    %392 = arith.mulf %387, %390 : vector<8x32xf32>
    %393 = arith.addf %391, %392 : vector<8x32xf32>
    %394 = math.tanh %393 : vector<8x32xf32>
    %395 = arith.mulf %389, %394 : vector<8x32xf32>
    %c56 = arith.constant 56 : index
    %c0_69 = arith.constant 0 : index
    %396 = vector.load %arg12[%c56, %c0_69] : memref<64x128xf32, #tpu.memory_space<vmem>>, vector<8x128xf32>
    %cst_70 = arith.constant dense<0.000000e+00> : vector<8x128xf32>
    %397 = tpu.matmul %359, %8, %cst_70 {dimension_numbers = #tpu.dot_dimension_numbers<[1], [0], [0], [1], [0, 0, 1, 1], [], []>} : vector<8x32xf32>, vector<32x128xf32>, vector<8x128xf32> -> vector<8x128xf32>
    %398 = arith.addf %396, %397 : vector<8x128xf32>
    %399 = arith.negf %398 : vector<8x128xf32>
    %400 = math.exp %399 : vector<8x128xf32>
    %cst_71 = arith.constant 1.000000e+00 : f32
    %401 = vector.broadcast %cst_71 : f32 to vector<8x128xf32>
    %402 = arith.addf %401, %400 : vector<8x128xf32>
    %403 = arith.divf %401, %402 : vector<8x128xf32>
    %404 = math.tanh %398 : vector<8x128xf32>
    %405 = vector.extract_strided_slice %403 {offsets = [0, 0], sizes = [8, 32], strides = [1, 1]} : vector<8x128xf32> to vector<8x32xf32>
    %406 = vector.extract_strided_slice %403 {offsets = [0, 32], sizes = [8, 32], strides = [1, 1]} : vector<8x128xf32> to vector<8x32xf32>
    %407 = vector.extract_strided_slice %403 {offsets = [0, 64], sizes = [8, 32], strides = [1, 1]} : vector<8x128xf32> to vector<8x32xf32>
    %408 = vector.extract_strided_slice %404 {offsets = [0, 96], sizes = [8, 32], strides = [1, 1]} : vector<8x128xf32> to vector<8x32xf32>
    %409 = arith.mulf %406, %357 : vector<8x32xf32>
    %410 = arith.mulf %405, %408 : vector<8x32xf32>
    %411 = arith.addf %409, %410 : vector<8x32xf32>
    %412 = math.tanh %411 : vector<8x32xf32>
    %413 = arith.mulf %407, %412 : vector<8x32xf32>
    %414 = tpu.concatenate %413, %377 in 1 : vector<8x32xf32>, vector<8x32xf32> -> vector<8x64xf32>
    %cst_72 = arith.constant dense<0.000000e+00> : vector<8x128xf32>
    %415 = tpu.matmul %414, %9, %cst_72 {dimension_numbers = #tpu.dot_dimension_numbers<[1], [0], [0], [1], [0, 0, 1, 1], [], []>} : vector<8x64xf32>, vector<64x128xf32>, vector<8x128xf32> -> vector<8x128xf32>
    %416 = arith.addf %415, %13 : vector<8x128xf32>
    %417 = arith.negf %416 : vector<8x128xf32>
    %418 = math.exp %417 : vector<8x128xf32>
    %cst_73 = arith.constant 1.000000e+00 : f32
    %419 = vector.broadcast %cst_73 : f32 to vector<8x128xf32>
    %420 = arith.addf %419, %418 : vector<8x128xf32>
    %421 = arith.divf %419, %420 : vector<8x128xf32>
    %422 = math.tanh %416 : vector<8x128xf32>
    %423 = vector.extract_strided_slice %421 {offsets = [0, 0], sizes = [8, 32], strides = [1, 1]} : vector<8x128xf32> to vector<8x32xf32>
    %424 = vector.extract_strided_slice %421 {offsets = [0, 32], sizes = [8, 32], strides = [1, 1]} : vector<8x128xf32> to vector<8x32xf32>
    %425 = vector.extract_strided_slice %421 {offsets = [0, 64], sizes = [8, 32], strides = [1, 1]} : vector<8x128xf32> to vector<8x32xf32>
    %426 = vector.extract_strided_slice %422 {offsets = [0, 96], sizes = [8, 32], strides = [1, 1]} : vector<8x128xf32> to vector<8x32xf32>
    %427 = arith.mulf %424, %375 : vector<8x32xf32>
    %428 = arith.mulf %423, %426 : vector<8x32xf32>
    %429 = arith.addf %427, %428 : vector<8x32xf32>
    %430 = math.tanh %429 : vector<8x32xf32>
    %431 = arith.mulf %425, %430 : vector<8x32xf32>
    %432 = tpu.concatenate %431, %395 in 1 : vector<8x32xf32>, vector<8x32xf32> -> vector<8x64xf32>
    %cst_74 = arith.constant dense<0.000000e+00> : vector<8x128xf32>
    %433 = tpu.matmul %432, %10, %cst_74 {dimension_numbers = #tpu.dot_dimension_numbers<[1], [0], [0], [1], [0, 0, 1, 1], [], []>} : vector<8x64xf32>, vector<64x128xf32>, vector<8x128xf32> -> vector<8x128xf32>
    %434 = arith.addf %433, %16 : vector<8x128xf32>
    %435 = arith.negf %434 : vector<8x128xf32>
    %436 = math.exp %435 : vector<8x128xf32>
    %cst_75 = arith.constant 1.000000e+00 : f32
    %437 = vector.broadcast %cst_75 : f32 to vector<8x128xf32>
    %438 = arith.addf %437, %436 : vector<8x128xf32>
    %439 = arith.divf %437, %438 : vector<8x128xf32>
    %440 = math.tanh %434 : vector<8x128xf32>
    %441 = vector.extract_strided_slice %439 {offsets = [0, 0], sizes = [8, 32], strides = [1, 1]} : vector<8x128xf32> to vector<8x32xf32>
    %442 = vector.extract_strided_slice %439 {offsets = [0, 32], sizes = [8, 32], strides = [1, 1]} : vector<8x128xf32> to vector<8x32xf32>
    %443 = vector.extract_strided_slice %439 {offsets = [0, 64], sizes = [8, 32], strides = [1, 1]} : vector<8x128xf32> to vector<8x32xf32>
    %444 = vector.extract_strided_slice %440 {offsets = [0, 96], sizes = [8, 32], strides = [1, 1]} : vector<8x128xf32> to vector<8x32xf32>
    %445 = arith.mulf %442, %393 : vector<8x32xf32>
    %446 = arith.mulf %441, %444 : vector<8x32xf32>
    %447 = arith.addf %445, %446 : vector<8x32xf32>
    %448 = math.tanh %447 : vector<8x32xf32>
    %449 = arith.mulf %443, %448 : vector<8x32xf32>
    %c0_76 = arith.constant 0 : index
    %c0_77 = arith.constant 0 : index
    %450 = vector.load %arg9[%c0_76, %c0_77] : memref<32x4xf32, #tpu.memory_space<vmem>>, vector<32x4xf32>
    %cst_78 = arith.constant dense<0.000000e+00> : vector<8x4xf32>
    %451 = tpu.matmul %449, %450, %cst_78 {dimension_numbers = #tpu.dot_dimension_numbers<[1], [0], [0], [1], [0, 0, 1, 1], [], []>} : vector<8x32xf32>, vector<32x4xf32>, vector<8x4xf32> -> vector<8x4xf32>
    %c0_79 = arith.constant 0 : index
    %c0_80 = arith.constant 0 : index
    %452 = vector.load %arg10[%c0_79, %c0_80] : memref<1x4xf32, #tpu.memory_space<vmem>>, vector<1x4xf32>
    %453 = vector.broadcast %452 : vector<1x4xf32> to vector<8x4xf32>
    %454 = arith.addf %451, %453 : vector<8x4xf32>
    %c0_81 = arith.constant 0 : index
    %c0_82 = arith.constant 0 : index
    %455 = vector.load %arg11[%c0_81, %c0_82] : memref<8x4xf32, #tpu.memory_space<vmem>>, vector<8x4xf32>
    tpu.vector_store %arg11[%c0_81, %c0_82], %454 {strides = array<i32>} : memref<8x4xf32, #tpu.memory_space<vmem>>, vector<8x4xf32>,
    return
  }
  func.func @transform_0(%arg0: i32) -> (i32, i32, i32) {
    %c0_i32 = arith.constant 0 : i32
    %c0_i32_0 = arith.constant 0 : i32
    %c0_i32_1 = arith.constant 0 : i32
    return %c0_i32, %arg0, %c0_i32_0 : i32, i32, i32
  }
  func.func @transform_1(%arg0: i32) -> (i32, i32) {
    %c0_i32 = arith.constant 0 : i32
    %c0_i32_0 = arith.constant 0 : i32
    %c0_i32_1 = arith.constant 0 : i32
    return %c0_i32, %c0_i32_0 : i32, i32
  }
  func.func @transform_2(%arg0: i32) -> (i32, i32) {
    %c0_i32 = arith.constant 0 : i32
    %c0_i32_0 = arith.constant 0 : i32
    %c0_i32_1 = arith.constant 0 : i32
    return %c0_i32, %c0_i32_0 : i32, i32
  }
  func.func @transform_3(%arg0: i32) -> (i32, i32) {
    %c0_i32 = arith.constant 0 : i32
    %c0_i32_0 = arith.constant 0 : i32
    %c0_i32_1 = arith.constant 0 : i32
    return %c0_i32, %c0_i32_0 : i32, i32
  }
  func.func @transform_4(%arg0: i32) -> (i32, i32) {
    %c0_i32 = arith.constant 0 : i32
    %c0_i32_0 = arith.constant 0 : i32
    %c0_i32_1 = arith.constant 0 : i32
    return %c0_i32, %c0_i32_0 : i32, i32
  }
  func.func @transform_5(%arg0: i32) -> (i32, i32) {
    %c0_i32 = arith.constant 0 : i32
    %c0_i32_0 = arith.constant 0 : i32
    %c0_i32_1 = arith.constant 0 : i32
    return %c0_i32, %c0_i32_0 : i32, i32
  }
  func.func @transform_6(%arg0: i32) -> (i32, i32) {
    %c0_i32 = arith.constant 0 : i32
    %c0_i32_0 = arith.constant 0 : i32
    %c0_i32_1 = arith.constant 0 : i32
    return %c0_i32, %c0_i32_0 : i32, i32
  }
  func.func @transform_7(%arg0: i32) -> (i32, i32) {
    %c0_i32 = arith.constant 0 : i32
    %c0_i32_0 = arith.constant 0 : i32
    %c0_i32_1 = arith.constant 0 : i32
    return %c0_i32, %c0_i32_0 : i32, i32
  }
  func.func @transform_8(%arg0: i32) -> (i32, i32) {
    %c0_i32 = arith.constant 0 : i32
    %c0_i32_0 = arith.constant 0 : i32
    %c0_i32_1 = arith.constant 0 : i32
    return %c0_i32, %c0_i32_0 : i32, i32
  }
  func.func @transform_9(%arg0: i32) -> (i32, i32) {
    %c0_i32 = arith.constant 0 : i32
    %c0_i32_0 = arith.constant 0 : i32
    %c0_i32_1 = arith.constant 0 : i32
    return %c0_i32, %c0_i32_0 : i32, i32
  }
  func.func @transform_10(%arg0: i32) -> (i32, i32) {
    %c0_i32 = arith.constant 0 : i32
    %c0_i32_0 = arith.constant 0 : i32
    return %arg0, %c0_i32 : i32, i32
  }
}

</mosaic_0001>

<llo_original>
// kernel: tpu_custom_call.1
$region0: #{tpu_custom_call.1}
  #allocation0 [shape = 'u32[]', space=smem, size = 0x4, offset = 0x4, fixed_abs, tag = 'smem constant byte address 0x4 - core index']
  #allocation1 [shape = 'u32[72,128]{1,0:T(1,128)}', space=vmem, size = 0x9000, scoped, tag = 'internal scratch']
  #allocation2 [shape = 'f32[64,128]{1,0:T(8,128)}', space=vmem, size = 0x8000, scoped, tag = 'scratch operand']
  %s0 = inlined_call_operand.hbm [shape: f32[8,8,8], index: 0, kind: input, shape index: {}]
  %s1 = inlined_call_operand.hbm [shape: f32[8,128], index: 1, kind: input, shape index: {}]
  %s2 = inlined_call_operand.vmem [shape: f32[32,128], index: 2, kind: input, shape index: {}]
  %s3 = inlined_call_operand.vmem [shape: f32[1,128], index: 3, kind: input, shape index: {}]
  %s4 = inlined_call_operand.hbm [shape: f32[64,128], index: 4, kind: input, shape index: {}]
  %s5 = inlined_call_operand.vmem [shape: f32[1,128], index: 5, kind: input, shape index: {}]
  %s6 = inlined_call_operand.hbm [shape: f32[64,128], index: 6, kind: input, shape index: {}]
  %s7 = inlined_call_operand.vmem [shape: f32[1,128], index: 7, kind: input, shape index: {}]
  %s8 = inlined_call_operand.vmem [shape: f32[32,4], index: 8, kind: input, shape index: {}]
  %s9 = inlined_call_operand.vmem [shape: f32[1,4], index: 9, kind: input, shape index: {}]
  %s10 = inlined_call_operand.vmem [shape: f32[8,4], index: 10, kind: output, shape index: {}]
  %s11 = sld [smem:[#allocation0]]
  $region66: #{tpu_custom_call.1} parent=0
    _
  %s13 = ssub.s32 1, %s11
  %s14 = scalar_select 0, %s13, %s11
  $region1: #{tpu_custom_call.1} parent=0
    #allocation3 [shape = 'u8[32768]{0}', space=vmem, size = 0x8000, scoped, tag = 'input window, operand 0, single buffered']
    #allocation4 [shape = 's32[1]{0}', space=sflag, size = 0x4, scoped, tag = 'scoped memory for tpu_custom_call.1']
    #allocation5 [shape = 'u8[4096]{0}', space=vmem, size = 0x1000, scoped, tag = 'input window, operand 1, single buffered']
    #allocation6 [shape = 's32[1]{0}', space=sflag, size = 0x4, scoped, tag = 'scoped memory for tpu_custom_call.1']
    #allocation7 [shape = 'u8[32768]{0}', space=vmem, size = 0x8000, scoped, tag = 'input window, operand 4, single buffered']
    #allocation8 [shape = 'u8[32768]{0}', space=vmem, size = 0x8000, scoped, tag = 'input window, operand 6, single buffered']
    #allocation9 [shape = 's32[1]{0}', space=sflag, size = 0x4, scoped, tag = 'scoped memory for tpu_custom_call.1']
    %15 = vsyncpa [#allocation4], 0
    %16 = vsyncpa [#allocation6], 0
    %17 = vsyncpa [#allocation9], 0
    // Predicated region
    $region2: #{tpu_custom_call.1} parent=1 // pred_check
      _
    $region3: #{tpu_custom_call.1} parent=1 // pred_check_branch
      %19 = sbr.rel (0) target = $region5
    $region4: #{tpu_custom_call.1} parent=1 // pred_region
      %21 = vsyncadd [#allocation4], 0
      %s22 = sshll.u32 %s0, 4
      %s23 = int_to_ptr.hbm [resolvable:$true] %s22
      %s24 = sshll.u32 [#allocation3], 4
      %s25 = int_to_ptr.vmem [resolvable:$true] %s24
      %30 = dma.hbm_to_vmem [thread:$0]  %s23, 1024, %s25, [#allocation4], 128, 128, 8
    $region5: #{tpu_custom_call.1} parent=1 // pred_fallthru
      _
    // Predicated region
    $region6: #{tpu_custom_call.1} parent=1 // pred_check
      _
    $region7: #{tpu_custom_call.1} parent=1 // pred_check_branch
      %32 = sbr.rel (0) target = $region9
    $region8: #{tpu_custom_call.1} parent=1 // pred_region
      %34 = vsyncadd [#allocation6], 0
      %s36 = sshll.u32 %s1, 4
      %s37 = int_to_ptr.hbm [resolvable:$true] %s36
      %s38 = sshll.u32 [#allocation5], 4
      %s39 = int_to_ptr.vmem [resolvable:$true] %s38
      %41 = dma.hbm_to_vmem [thread:$0]  %s37, 128, %s39, [#allocation6]
    $region9: #{tpu_custom_call.1} parent=1 // pred_fallthru
      _
    // Predicated region
    $region10: #{tpu_custom_call.1} parent=1 // pred_check
      _
    $region11: #{tpu_custom_call.1} parent=1 // pred_check_branch
      %43 = sbr.rel (0) target = $region13
    $region12: #{tpu_custom_call.1} parent=1 // pred_region
      _
    $region13: #{tpu_custom_call.1} parent=1 // pred_fallthru
      _
    // Predicated region
    $region14: #{tpu_custom_call.1} parent=1 // pred_check
      _
    $region15: #{tpu_custom_call.1} parent=1 // pred_check_branch
      %45 = sbr.rel (0) target = $region17
    $region16: #{tpu_custom_call.1} parent=1 // pred_region
      _
    $region17: #{tpu_custom_call.1} parent=1 // pred_fallthru
      _
    // Predicated region
    $region18: #{tpu_custom_call.1} parent=1 // pred_check
      _
    $region19: #{tpu_custom_call.1} parent=1 // pred_check_branch
      %47 = sbr.rel (0) target = $region21
    $region20: #{tpu_custom_call.1} parent=1 // pred_region
      %49 = vsyncadd [#allocation6], 0
      %s50 = sshll.u32 %s4, 4
      %s51 = int_to_ptr.hbm [resolvable:$true] %s50
      %s52 = sshll.u32 [#allocation7], 4
      %s53 = int_to_ptr.vmem [resolvable:$true] %s52
      %58 = dma.hbm_to_vmem [thread:$0]  %s51, 1024, %s53, [#allocation6], 128, 128, 8
    $region21: #{tpu_custom_call.1} parent=1 // pred_fallthru
      _
    // Predicated region
    $region22: #{tpu_custom_call.1} parent=1 // pred_check
      _
    $region23: #{tpu_custom_call.1} parent=1 // pred_check_branch
      %60 = sbr.rel (0) target = $region25
    $region24: #{tpu_custom_call.1} parent=1 // pred_region
      _
    $region25: #{tpu_custom_call.1} parent=1 // pred_fallthru
      _
    // Predicated region
    $region26: #{tpu_custom_call.1} parent=1 // pred_check
      _
    $region27: #{tpu_custom_call.1} parent=1 // pred_check_branch
      %62 = sbr.rel (0) target = $region29
    $region28: #{tpu_custom_call.1} parent=1 // pred_region
      %64 = vsyncadd [#allocation9], 0
      %s65 = sshll.u32 %s6, 4
      %s66 = int_to_ptr.hbm [resolvable:$true] %s65
      %s67 = sshll.u32 [#allocation8], 4
      %s68 = int_to_ptr.vmem [resolvable:$true] %s67
      %73 = dma.hbm_to_vmem [thread:$0]  %s66, 1024, %s68, [#allocation9], 128, 128, 8
    $region29: #{tpu_custom_call.1} parent=1 // pred_fallthru
      _
    // Predicated region
    $region30: #{tpu_custom_call.1} parent=1 // pred_check
      _
    $region31: #{tpu_custom_call.1} parent=1 // pred_check_branch
      %75 = sbr.rel (0) target = $region33
    $region32: #{tpu_custom_call.1} parent=1 // pred_region
      _
    $region33: #{tpu_custom_call.1} parent=1 // pred_fallthru
      _
    // Predicated region
    $region34: #{tpu_custom_call.1} parent=1 // pred_check
      _
    $region35: #{tpu_custom_call.1} parent=1 // pred_check_branch
      %77 = sbr.rel (0) target = $region37
    $region36: #{tpu_custom_call.1} parent=1 // pred_region
      _
    $region37: #{tpu_custom_call.1} parent=1 // pred_fallthru
      _
    // Predicated region
    $region38: #{tpu_custom_call.1} parent=1 // pred_check
      _
    $region39: #{tpu_custom_call.1} parent=1 // pred_check_branch
      %79 = sbr.rel (0) target = $region41
    $region40: #{tpu_custom_call.1} parent=1 // pred_region
      _
    $region41: #{tpu_custom_call.1} parent=1 // pred_fallthru
      _
    // Predicated region
    $region42: #{tpu_custom_call.1} parent=1 // pred_check
      _
    $region43: #{tpu_custom_call.1} parent=1 // pred_check_branch
      %81 = sbr.rel (0) target = $region45
    $region44: #{tpu_custom_call.1} parent=1 // pred_region
      %83 = dma.done [#allocation4], 1024
    $region45: #{tpu_custom_call.1} parent=1 // pred_fallthru
      _
    // Predicated region
    $region46: #{tpu_custom_call.1} parent=1 // pred_check
      _
    $region47: #{tpu_custom_call.1} parent=1 // pred_check_branch
      %85 = sbr.rel (0) target = $region49
    $region48: #{tpu_custom_call.1} parent=1 // pred_region
      %87 = dma.done [#allocation6], 128
    $region49: #{tpu_custom_call.1} parent=1 // pred_fallthru
      _
    // Predicated region
    $region50: #{tpu_custom_call.1} parent=1 // pred_check
      _
    $region51: #{tpu_custom_call.1} parent=1 // pred_check_branch
      %89 = sbr.rel (0) target = $region53
    $region52: #{tpu_custom_call.1} parent=1 // pred_region
      %91 = dma.done [#allocation6], 1024
    $region53: #{tpu_custom_call.1} parent=1 // pred_fallthru
      _
    // Predicated region
    $region54: #{tpu_custom_call.1} parent=1 // pred_check
      _
    $region55: #{tpu_custom_call.1} parent=1 // pred_check_branch
      %93 = sbr.rel (0) target = $region57
    $region56: #{tpu_custom_call.1} parent=1 // pred_region
      %95 = dma.done [#allocation9], 1024
    $region57: #{tpu_custom_call.1} parent=1 // pred_fallthru
      _
    %v96 = vld [vmem:[#allocation3] sm:$0xff]
    %v97 = vld [vmem:[#allocation3 + $0x8] sm:$0xff]
    %v98 = vld [vmem:[#allocation3 + $0x10] sm:$0xff]
    %v99 = vld [vmem:[#allocation3 + $0x18] sm:$0xff]
    %v100 = vld [vmem:[#allocation3 + $0x20] sm:$0xff]
    %v101 = vld [vmem:[#allocation3 + $0x28] sm:$0xff]
    %v102 = vld [vmem:[#allocation3 + $0x30] sm:$0xff]
    %v103 = vld [vmem:[#allocation3 + $0x38] sm:$0xff]
    %v104 = vld [vmem:[#allocation5] sm:$0xff]
    %v105 = vld [vmem:[%s3] sm:$0x1]
    %v107 = vperm.slane %v105, 0
    %vm109 = vcmask 64512
    %v111 = vsel %vm109, %v96, 0
    %v114 = vsel %vm109, %v97, 0
    %v117 = vsel %vm109, %v98, 0
    %v120 = vsel %vm109, %v99, 0
    %v123 = vsel %vm109, %v100, 0
    %v126 = vsel %vm109, %v101, 0
    %v129 = vsel %vm109, %v102, 0
    %v132 = vsel %vm109, %v103, 0
    %134 = vmatpush.msra.mxu0 0.0
    %135 = vmatpush.msra.mxu0 0.0
    %136 = vmatpush.msra.mxu0 0.0
    %137 = vmatpush.msra.mxu0 0.0
    %138 = vmatpush.msra.mxu0 0.0
    %139 = vmatpush.msra.mxu0 0.0
    %140 = vmatpush.msra.mxu0 0.0
    %141 = vmatpush.msra.mxu0 0.0
    %142 = vmatpush.msra.mxu0 0.0
    %143 = vmatpush.msra.mxu0 0.0
    %144 = vmatpush.msra.mxu0 0.0
    %145 = vmatpush.msra.mxu0 0.0
    %146 = vmatpush.msra.mxu0 0.0
    %147 = vmatpush.msra.mxu0 0.0
    %148 = vmatpush.msra.mxu0 0.0
    %149 = vmatpush.msra.mxu0 %v104
    %150 = vmatmul.f32.gmra.mxu0 %v111
    %v151 = vpop.f32.mrf.mxu0
    %v152 = vadd.f32 %v107, %v151
    %153 = vmatmul.f32.gmra.mxu0 %v114
    %v154 = vpop.f32.mrf.mxu0
    %v155 = vadd.f32 %v107, %v154
    %156 = vmatmul.f32.gmra.mxu0 %v117
    %v157 = vpop.f32.mrf.mxu0
    %v158 = vadd.f32 %v107, %v157
    %159 = vmatmul.f32.gmra.mxu0 %v120
    %v160 = vpop.f32.mrf.mxu0
    %v161 = vadd.f32 %v107, %v160
    %162 = vmatmul.f32.gmra.mxu0 %v123
    %v163 = vpop.f32.mrf.mxu0
    %v164 = vadd.f32 %v107, %v163
    %165 = vmatmul.f32.gmra.mxu0 %v126
    %v166 = vpop.f32.mrf.mxu0
    %v167 = vadd.f32 %v107, %v166
    %168 = vmatmul.f32.gmra.mxu0 %v129
    %v169 = vpop.f32.mrf.mxu0
    %v170 = vadd.f32 %v107, %v169
    %171 = vmatmul.f32.gmra.mxu0 %v132
    %v172 = vpop.f32.mrf.mxu0
    %v173 = vadd.f32 %v107, %v172
    %174 = vdwg.mxu0
    %175 = vst [vmem:[#allocation2] sm:$0xff] %v152
    %176 = vst [vmem:[#allocation2 + $0x8] sm:$0xff] %v155
    %177 = vst [vmem:[#allocation2 + $0x10] sm:$0xff] %v158
    %178 = vst [vmem:[#allocation2 + $0x18] sm:$0xff] %v161
    %179 = vst [vmem:[#allocation2 + $0x20] sm:$0xff] %v164
    %180 = vst [vmem:[#allocation2 + $0x28] sm:$0xff] %v167
    %181 = vst [vmem:[#allocation2 + $0x30] sm:$0xff] %v170
    %182 = vst [vmem:[#allocation2 + $0x38] sm:$0xff] %v173
    %v183 = vld [vmem:[%s2] sm:$0xff]
    %v184 = vld [vmem:[%s2 + $0x8] sm:$0xff]
    %v185 = vld [vmem:[%s2 + $0x10] sm:$0xff]
    %v186 = vld [vmem:[%s2 + $0x18] sm:$0xff]
    %v187 = vld [vmem:[#allocation7] sm:$0xff]
    %v188 = vld [vmem:[#allocation7 + $0x8] sm:$0xff]
    %v189 = vld [vmem:[#allocation7 + $0x10] sm:$0xff]
    %v190 = vld [vmem:[#allocation7 + $0x18] sm:$0xff]
    %v191 = vld [vmem:[#allocation7 + $0x20] sm:$0xff]
    %v192 = vld [vmem:[#allocation7 + $0x28] sm:$0xff]
    %v193 = vld [vmem:[#allocation7 + $0x30] sm:$0xff]
    %v194 = vld [vmem:[#allocation7 + $0x38] sm:$0xff]
    %v195 = vld [vmem:[#allocation8] sm:$0xff]
    %v196 = vld [vmem:[#allocation8 + $0x8] sm:$0xff]
    %v197 = vld [vmem:[#allocation8 + $0x10] sm:$0xff]
    %v198 = vld [vmem:[#allocation8 + $0x18] sm:$0xff]
    %v199 = vld [vmem:[#allocation8 + $0x20] sm:$0xff]
    %v200 = vld [vmem:[#allocation8 + $0x28] sm:$0xff]
    %v201 = vld [vmem:[#allocation8 + $0x30] sm:$0xff]
    %v202 = vld [vmem:[#allocation8 + $0x38] sm:$0xff]
    %v203 = vld [vmem:[%s5] sm:$0x1]
    %v205 = vperm.slane %v203, 0
    %v207 = vld [vmem:[%s7] sm:$0x1]
    %v209 = vperm.slane %v207, 0
    %v211 = vld [vmem:[#allocation2] sm:$0xff]
    %vm212 = vcmask 261120
    %v214 = vsel %vm212, 0.0, 0
    %216 = vmatpush.msra.mxu0 0.0
    %217 = vmatpush.msra.mxu0 0.0
    %218 = vmatpush.msra.mxu0 0.0
    %219 = vmatpush.msra.mxu0 0.0
    %220 = vmatpush.msra.mxu0 0.0
    %221 = vmatpush.msra.mxu0 0.0
    %222 = vmatpush.msra.mxu0 0.0
    %223 = vmatpush.msra.mxu0 0.0
    %224 = vmatpush.msra.mxu0 0.0
    %225 = vmatpush.msra.mxu0 0.0
    %226 = vmatpush.msra.mxu0 0.0
    %227 = vmatpush.msra.mxu0 0.0
    %228 = vmatpush.msra.mxu0 %v186
    %229 = vmatpush.msra.mxu0 %v185
    %230 = vmatpush.msra.mxu0 %v184
    %231 = vmatpush.msra.mxu0 %v183
    %232 = vmatmul.f32.gmra.mxu0 %v214
    %v233 = vpop.f32.mrf.mxu0
    %v234 = vadd.f32 0.0, %v233
    %235 = vdwg.mxu0
    %v236 = vadd.f32 %v211, %v234
    %v237 = vxor.u32 %v236, 2147483648
    %v238 = vmul.f32 %v237, 1.442695
    %v239 = vpow.pop %v238
    %v240 = vadd.f32 %v239, 1.0
    %v241 = vrcp.pop %v240
    %v242 = vmul.f32 %v240, %v241
    %v243 = vsub.f32 1.0, %v242
    %v244 = vmul.f32 %v241, %v243
    %v245 = vadd.f32 %v241, %v244
    %vm246 = vweird.f32 %v240
    %vm247 = vweird.f32 %v241
    %vm248 = vmor %vm246, %vm247
    %v249 = vsel %vm248, %v241, %v245
    %v250 = vand.u32 2147483647, %v240
    %vm251 = vcmp.eq.f32.partialorder %v250, 8.507059e+37
    %v252 = vand.u32 %v240, 2147483648
    %v253 = vor.u32 1.1754944e-38, %v252
    %v254 = vsel %vm251, %v253, %v249
    %v255 = vmul.f32 1.0, %v254
    %v256 = vtanh.pop %v236
    %v257 = vmul.f32 %v255, 0.0
    %259 = vrot.lane.b32.xlu0 %v256, 32
    %v260 = vpop.permute.xlu0 %259
    %v262 = vmul.f32 %v255, %v260
    %264 = vrot.lane.b32.xlu0 %v262, 32
    %v265 = vpop.permute.xlu0 %264
    %v267 = vadd.f32 %v257, %v265
    %v268 = vtanh.pop %v267
    %270 = vrot.lane.b32.xlu0 %v268, 32
    %v271 = vpop.permute.xlu0 %270
    %v273 = vmul.f32 %v255, %v271
    %275 = vrot.lane.b32.xlu0 %v273, 64
    %v276 = vpop.permute.xlu0 %275
    %v278 = vsel %vm212, %v276, 0.0
    %vm279 = vcmask 523264
    %v281 = vsel %vm279, %v278, 0
    %283 = vmatpush.msra.mxu0 0.0
    %284 = vmatpush.msra.mxu0 0.0
    %285 = vmatpush.msra.mxu0 0.0
    %286 = vmatpush.msra.mxu0 0.0
    %287 = vmatpush.msra.mxu0 0.0
    %288 = vmatpush.msra.mxu0 0.0
    %289 = vmatpush.msra.mxu0 0.0
    %290 = vmatpush.msra.mxu0 0.0
    %291 = vmatpush.msra.mxu0 %v194
    %292 = vmatpush.msra.mxu0 %v193
    %293 = vmatpush.msra.mxu0 %v192
    %294 = vmatpush.msra.mxu0 %v191
    %295 = vmatpush.msra.mxu0 %v190
    %296 = vmatpush.msra.mxu0 %v189
    %297 = vmatpush.msra.mxu0 %v188
    %298 = vmatpush.msra.mxu0 %v187
    %299 = vmatmul.f32.gmra.mxu0 %v281
    %v300 = vpop.f32.mrf.mxu0
    %v301 = vadd.f32 %v205, %v300
    %302 = vdwg.mxu0
    %v303 = vxor.u32 %v301, 2147483648
    %v304 = vmul.f32 %v303, 1.442695
    %v305 = vpow.pop %v304
    %v306 = vadd.f32 %v305, 1.0
    %v307 = vrcp.pop %v306
    %v308 = vmul.f32 %v306, %v307
    %v309 = vsub.f32 1.0, %v308
    %v310 = vmul.f32 %v307, %v309
    %v311 = vadd.f32 %v307, %v310
    %vm312 = vweird.f32 %v306
    %vm313 = vweird.f32 %v307
    %vm314 = vmor %vm312, %vm313
    %v315 = vsel %vm314, %v307, %v311
    %v316 = vand.u32 2147483647, %v306
    %vm317 = vcmp.eq.f32.partialorder %v316, 8.507059e+37
    %v318 = vand.u32 %v306, 2147483648
    %v319 = vor.u32 1.1754944e-38, %v318
    %v320 = vsel %vm317, %v319, %v315
    %v321 = vmul.f32 1.0, %v320
    %v322 = vtanh.pop %v301
    %v323 = vmul.f32 %v321, 0.0
    %325 = vrot.lane.b32.xlu0 %v322, 32
    %v326 = vpop.permute.xlu0 %325
    %v328 = vmul.f32 %v321, %v326
    %330 = vrot.lane.b32.xlu0 %v328, 32
    %v331 = vpop.permute.xlu0 %330
    %v333 = vadd.f32 %v323, %v331
    %v334 = vtanh.pop %v333
    %336 = vrot.lane.b32.xlu0 %v334, 32
    %v337 = vpop.permute.xlu0 %336
    %v339 = vmul.f32 %v321, %v337
    %341 = vrot.lane.b32.xlu0 %v339, 64
    %v342 = vpop.permute.xlu0 %341
    %v344 = vsel %vm212, %v342, 0.0
    %v346 = vsel %vm279, %v344, 0
    %348 = vmatpush.msra.mxu0 0.0
    %349 = vmatpush.msra.mxu0 0.0
    %350 = vmatpush.msra.mxu0 0.0
    %351 = vmatpush.msra.mxu0 0.0
    %352 = vmatpush.msra.mxu0 0.0
    %353 = vmatpush.msra.mxu0 0.0
    %354 = vmatpush.msra.mxu0 0.0
    %355 = vmatpush.msra.mxu0 0.0
    %356 = vmatpush.msra.mxu0 %v202
    %357 = vmatpush.msra.mxu0 %v201
    %358 = vmatpush.msra.mxu0 %v200
    %359 = vmatpush.msra.mxu0 %v199
    %360 = vmatpush.msra.mxu0 %v198
    %361 = vmatpush.msra.mxu0 %v197
    %362 = vmatpush.msra.mxu0 %v196
    %363 = vmatpush.msra.mxu0 %v195
    %364 = vmatmul.f32.gmra.mxu0 %v346
    %v365 = vpop.f32.mrf.mxu0
    %v366 = vadd.f32 %v209, %v365
    %367 = vdwg.mxu0
    %v368 = vxor.u32 %v366, 2147483648
    %v369 = vmul.f32 %v368, 1.442695
    %v370 = vpow.pop %v369
    %v371 = vadd.f32 %v370, 1.0
    %v372 = vrcp.pop %v371
    %v373 = vmul.f32 %v371, %v372
    %v374 = vsub.f32 1.0, %v373
    %v375 = vmul.f32 %v372, %v374
    %v376 = vadd.f32 %v372, %v375
    %vm377 = vweird.f32 %v371
    %vm378 = vweird.f32 %v372
    %vm379 = vmor %vm377, %vm378
    %v380 = vsel %vm379, %v372, %v376
    %v381 = vand.u32 2147483647, %v371
    %vm382 = vcmp.eq.f32.partialorder %v381, 8.507059e+37
    %v383 = vand.u32 %v371, 2147483648
    %v384 = vor.u32 1.1754944e-38, %v383
    %v385 = vsel %vm382, %v384, %v380
    %v386 = vmul.f32 1.0, %v385
    %v387 = vtanh.pop %v366
    %v388 = vmul.f32 %v386, 0.0
    %390 = vrot.lane.b32.xlu0 %v387, 32
    %v391 = vpop.permute.xlu0 %390
    %v393 = vmul.f32 %v386, %v391
    %395 = vrot.lane.b32.xlu0 %v393, 32
    %v396 = vpop.permute.xlu0 %395
    %v398 = vadd.f32 %v388, %v396
    %v399 = vtanh.pop %v398
    %401 = vrot.lane.b32.xlu0 %v399, 32
    %v402 = vpop.permute.xlu0 %401
    %v404 = vmul.f32 %v386, %v402
    %v405 = vld [vmem:[#allocation2 + $0x8] sm:$0xff]
    %v406 = vsel %vm212, %v276, 0
    %408 = vmatpush.msra.mxu0 0.0
    %409 = vmatpush.msra.mxu0 0.0
    %410 = vmatpush.msra.mxu0 0.0
    %411 = vmatpush.msra.mxu0 0.0
    %412 = vmatpush.msra.mxu0 0.0
    %413 = vmatpush.msra.mxu0 0.0
    %414 = vmatpush.msra.mxu0 0.0
    %415 = vmatpush.msra.mxu0 0.0
    %416 = vmatpush.msra.mxu0 0.0
    %417 = vmatpush.msra.mxu0 0.0
    %418 = vmatpush.msra.mxu0 0.0
    %419 = vmatpush.msra.mxu0 0.0
    %420 = vmatpush.msra.mxu0 %v186
    %421 = vmatpush.msra.mxu0 %v185
    %422 = vmatpush.msra.mxu0 %v184
    %423 = vmatpush.msra.mxu0 %v183
    %424 = vmatmul.f32.gmra.mxu0 %v406
    %v425 = vpop.f32.mrf.mxu0
    %v426 = vadd.f32 0.0, %v425
    %427 = vdwg.mxu0
    %v428 = vadd.f32 %v405, %v426
    %v429 = vxor.u32 %v428, 2147483648
    %v430 = vmul.f32 %v429, 1.442695
    %v431 = vpow.pop %v430
    %v432 = vadd.f32 %v431, 1.0
    %v433 = vrcp.pop %v432
    %v434 = vmul.f32 %v432, %v433
    %v435 = vsub.f32 1.0, %v434
    %v436 = vmul.f32 %v433, %v435
    %v437 = vadd.f32 %v433, %v436
    %vm438 = vweird.f32 %v432
    %vm439 = vweird.f32 %v433
    %vm440 = vmor %vm438, %vm439
    %v441 = vsel %vm440, %v433, %v437
    %v442 = vand.u32 2147483647, %v432
    %vm443 = vcmp.eq.f32.partialorder %v442, 8.507059e+37
    %v444 = vand.u32 %v432, 2147483648
    %v445 = vor.u32 1.1754944e-38, %v444
    %v446 = vsel %vm443, %v445, %v441
    %v447 = vmul.f32 1.0, %v446
    %v448 = vtanh.pop %v428
    %v449 = vmul.f32 %v447, %v267
    %451 = vrot.lane.b32.xlu0 %v448, 32
    %v452 = vpop.permute.xlu0 %451
    %v454 = vmul.f32 %v447, %v452
    %456 = vrot.lane.b32.xlu0 %v454, 32
    %v457 = vpop.permute.xlu0 %456
    %v459 = vadd.f32 %v449, %v457
    %v460 = vtanh.pop %v459
    %462 = vrot.lane.b32.xlu0 %v460, 32
    %v463 = vpop.permute.xlu0 %462
    %v465 = vmul.f32 %v447, %v463
    %467 = vrot.lane.b32.xlu0 %v465, 64
    %v468 = vpop.permute.xlu0 %467
    %470 = vrot.lane.b32.xlu0 %v339, 96
    %v471 = vpop.permute.xlu0 %470
    %v473 = vsel %vm212, %v468, %v471
    %v475 = vsel %vm279, %v473, 0
    %477 = vmatpush.msra.mxu0 0.0
    %478 = vmatpush.msra.mxu0 0.0
    %479 = vmatpush.msra.mxu0 0.0
    %480 = vmatpush.msra.mxu0 0.0
    %481 = vmatpush.msra.mxu0 0.0
    %482 = vmatpush.msra.mxu0 0.0
    %483 = vmatpush.msra.mxu0 0.0
    %484 = vmatpush.msra.mxu0 0.0
    %485 = vmatpush.msra.mxu0 %v194
    %486 = vmatpush.msra.mxu0 %v193
    %487 = vmatpush.msra.mxu0 %v192
    %488 = vmatpush.msra.mxu0 %v191
    %489 = vmatpush.msra.mxu0 %v190
    %490 = vmatpush.msra.mxu0 %v189
    %491 = vmatpush.msra.mxu0 %v188
    %492 = vmatpush.msra.mxu0 %v187
    %493 = vmatmul.f32.gmra.mxu0 %v475
    %v494 = vpop.f32.mrf.mxu0
    %v495 = vadd.f32 %v205, %v494
    %496 = vdwg.mxu0
    %v497 = vxor.u32 %v495, 2147483648
    %v498 = vmul.f32 %v497, 1.442695
    %v499 = vpow.pop %v498
    %v500 = vadd.f32 %v499, 1.0
    %v501 = vrcp.pop %v500
    %v502 = vmul.f32 %v500, %v501
    %v503 = vsub.f32 1.0, %v502
    %v504 = vmul.f32 %v501, %v503
    %v505 = vadd.f32 %v501, %v504
    %vm506 = vweird.f32 %v500
    %vm507 = vweird.f32 %v501
    %vm508 = vmor %vm506, %vm507
    %v509 = vsel %vm508, %v501, %v505
    %v510 = vand.u32 2147483647, %v500
    %vm511 = vcmp.eq.f32.partialorder %v510, 8.507059e+37
    %v512 = vand.u32 %v500, 2147483648
    %v513 = vor.u32 1.1754944e-38, %v512
    %v514 = vsel %vm511, %v513, %v509
    %v515 = vmul.f32 1.0, %v514
    %v516 = vtanh.pop %v495
    %v517 = vmul.f32 %v515, %v333
    %519 = vrot.lane.b32.xlu0 %v516, 32
    %v520 = vpop.permute.xlu0 %519
    %v522 = vmul.f32 %v515, %v520
    %524 = vrot.lane.b32.xlu0 %v522, 32
    %v525 = vpop.permute.xlu0 %524
    %v527 = vadd.f32 %v517, %v525
    %v528 = vtanh.pop %v527
    %530 = vrot.lane.b32.xlu0 %v528, 32
    %v531 = vpop.permute.xlu0 %530
    %v533 = vmul.f32 %v515, %v531
    %535 = vrot.lane.b32.xlu0 %v533, 64
    %v536 = vpop.permute.xlu0 %535
    %539 = vrot.lane.b32.xlu0 %v404, 96
    %v540 = vpop.permute.xlu0 %539
    %v542 = vsel %vm212, %v536, %v540
    %v544 = vsel %vm279, %v542, 0
    %546 = vmatpush.msra.mxu0 0.0
    %547 = vmatpush.msra.mxu0 0.0
    %548 = vmatpush.msra.mxu0 0.0
    %549 = vmatpush.msra.mxu0 0.0
    %550 = vmatpush.msra.mxu0 0.0
    %551 = vmatpush.msra.mxu0 0.0
    %552 = vmatpush.msra.mxu0 0.0
    %553 = vmatpush.msra.mxu0 0.0
    %554 = vmatpush.msra.mxu0 %v202
    %555 = vmatpush.msra.mxu0 %v201
    %556 = vmatpush.msra.mxu0 %v200
    %557 = vmatpush.msra.mxu0 %v199
    %558 = vmatpush.msra.mxu0 %v198
    %559 = vmatpush.msra.mxu0 %v197
    %560 = vmatpush.msra.mxu0 %v196
    %561 = vmatpush.msra.mxu0 %v195
    %562 = vmatmul.f32.gmra.mxu0 %v544
    %v563 = vpop.f32.mrf.mxu0
    %v564 = vadd.f32 %v209, %v563
    %565 = vdwg.mxu0
    %v566 = vxor.u32 %v564, 2147483648
    %v567 = vmul.f32 %v566, 1.442695
    %v568 = vpow.pop %v567
    %v569 = vadd.f32 %v568, 1.0
    %v570 = vrcp.pop %v569
    %v571 = vmul.f32 %v569, %v570
    %v572 = vsub.f32 1.0, %v571
    %v573 = vmul.f32 %v570, %v572
    %v574 = vadd.f32 %v570, %v573
    %vm575 = vweird.f32 %v569
    %vm576 = vweird.f32 %v570
    %vm577 = vmor %vm575, %vm576
    %v578 = vsel %vm577, %v570, %v574
    %v579 = vand.u32 2147483647, %v569
    %vm580 = vcmp.eq.f32.partialorder %v579, 8.507059e+37
    %v581 = vand.u32 %v569, 2147483648
    %v582 = vor.u32 1.1754944e-38, %v581
    %v583 = vsel %vm580, %v582, %v578
    %v584 = vmul.f32 1.0, %v583
    %v585 = vtanh.pop %v564
    %v586 = vmul.f32 %v584, %v398
    %588 = vrot.lane.b32.xlu0 %v585, 32
    %v589 = vpop.permute.xlu0 %588
    %v591 = vmul.f32 %v584, %v589
    %593 = vrot.lane.b32.xlu0 %v591, 32
    %v594 = vpop.permute.xlu0 %593
    %v596 = vadd.f32 %v586, %v594
    %v597 = vtanh.pop %v596
    %599 = vrot.lane.b32.xlu0 %v597, 32
    %v600 = vpop.permute.xlu0 %599
    %v602 = vmul.f32 %v584, %v600
    %v603 = vld [vmem:[#allocation2 + $0x10] sm:$0xff]
    %v604 = vsel %vm212, %v468, 0
    %606 = vmatpush.msra.mxu0 0.0
    %607 = vmatpush.msra.mxu0 0.0
    %608 = vmatpush.msra.mxu0 0.0
    %609 = vmatpush.msra.mxu0 0.0
    %610 = vmatpush.msra.mxu0 0.0
    %611 = vmatpush.msra.mxu0 0.0
    %612 = vmatpush.msra.mxu0 0.0
    %613 = vmatpush.msra.mxu0 0.0
    %614 = vmatpush.msra.mxu0 0.0
    %615 = vmatpush.msra.mxu0 0.0
    %616 = vmatpush.msra.mxu0 0.0
    %617 = vmatpush.msra.mxu0 0.0
    %618 = vmatpush.msra.mxu0 %v186
    %619 = vmatpush.msra.mxu0 %v185
    %620 = vmatpush.msra.mxu0 %v184
    %621 = vmatpush.msra.mxu0 %v183
    %622 = vmatmul.f32.gmra.mxu0 %v604
    %v623 = vpop.f32.mrf.mxu0
    %v624 = vadd.f32 0.0, %v623
    %625 = vdwg.mxu0
    %v626 = vadd.f32 %v603, %v624
    %v627 = vxor.u32 %v626, 2147483648
    %v628 = vmul.f32 %v627, 1.442695
    %v629 = vpow.pop %v628
    %v630 = vadd.f32 %v629, 1.0
    %v631 = vrcp.pop %v630
    %v632 = vmul.f32 %v630, %v631
    %v633 = vsub.f32 1.0, %v632
    %v634 = vmul.f32 %v631, %v633
    %v635 = vadd.f32 %v631, %v634
    %vm636 = vweird.f32 %v630
    %vm637 = vweird.f32 %v631
    %vm638 = vmor %vm636, %vm637
    %v639 = vsel %vm638, %v631, %v635
    %v640 = vand.u32 2147483647, %v630
    %vm641 = vcmp.eq.f32.partialorder %v640, 8.507059e+37
    %v642 = vand.u32 %v630, 2147483648
    %v643 = vor.u32 1.1754944e-38, %v642
    %v644 = vsel %vm641, %v643, %v639
    %v645 = vmul.f32 1.0, %v644
    %v646 = vtanh.pop %v626
    %v647 = vmul.f32 %v645, %v459
    %649 = vrot.lane.b32.xlu0 %v646, 32
    %v650 = vpop.permute.xlu0 %649
    %v652 = vmul.f32 %v645, %v650
    %654 = vrot.lane.b32.xlu0 %v652, 32
    %v655 = vpop.permute.xlu0 %654
    %v657 = vadd.f32 %v647, %v655
    %v658 = vtanh.pop %v657
    %660 = vrot.lane.b32.xlu0 %v658, 32
    %v661 = vpop.permute.xlu0 %660
    %v663 = vmul.f32 %v645, %v661
    %665 = vrot.lane.b32.xlu0 %v663, 64
    %v666 = vpop.permute.xlu0 %665
    %668 = vrot.lane.b32.xlu0 %v533, 96
    %v669 = vpop.permute.xlu0 %668
    %v671 = vsel %vm212, %v666, %v669
    %v673 = vsel %vm279, %v671, 0
    %675 = vmatpush.msra.mxu0 0.0
    %676 = vmatpush.msra.mxu0 0.0
    %677 = vmatpush.msra.mxu0 0.0
    %678 = vmatpush.msra.mxu0 0.0
    %679 = vmatpush.msra.mxu0 0.0
    %680 = vmatpush.msra.mxu0 0.0
    %681 = vmatpush.msra.mxu0 0.0
    %682 = vmatpush.msra.mxu0 0.0
    %683 = vmatpush.msra.mxu0 %v194
    %684 = vmatpush.msra.mxu0 %v193
    %685 = vmatpush.msra.mxu0 %v192
    %686 = vmatpush.msra.mxu0 %v191
    %687 = vmatpush.msra.mxu0 %v190
    %688 = vmatpush.msra.mxu0 %v189
    %689 = vmatpush.msra.mxu0 %v188
    %690 = vmatpush.msra.mxu0 %v187
    %691 = vmatmul.f32.gmra.mxu0 %v673
    %v692 = vpop.f32.mrf.mxu0
    %v693 = vadd.f32 %v205, %v692
    %694 = vdwg.mxu0
    %v695 = vxor.u32 %v693, 2147483648
    %v696 = vmul.f32 %v695, 1.442695
    %v697 = vpow.pop %v696
    %v698 = vadd.f32 %v697, 1.0
    %v699 = vrcp.pop %v698
    %v700 = vmul.f32 %v698, %v699
    %v701 = vsub.f32 1.0, %v700
    %v702 = vmul.f32 %v699, %v701
    %v703 = vadd.f32 %v699, %v702
    %vm704 = vweird.f32 %v698
    %vm705 = vweird.f32 %v699
    %vm706 = vmor %vm704, %vm705
    %v707 = vsel %vm706, %v699, %v703
    %v708 = vand.u32 2147483647, %v698
    %vm709 = vcmp.eq.f32.partialorder %v708, 8.507059e+37
    %v710 = vand.u32 %v698, 2147483648
    %v711 = vor.u32 1.1754944e-38, %v710
    %v712 = vsel %vm709, %v711, %v707
    %v713 = vmul.f32 1.0, %v712
    %v714 = vtanh.pop %v693
    %v715 = vmul.f32 %v713, %v527
    %717 = vrot.lane.b32.xlu0 %v714, 32
    %v718 = vpop.permute.xlu0 %717
    %v720 = vmul.f32 %v713, %v718
    %722 = vrot.lane.b32.xlu0 %v720, 32
    %v723 = vpop.permute.xlu0 %722
    %v725 = vadd.f32 %v715, %v723
    %v726 = vtanh.pop %v725
    %728 = vrot.lane.b32.xlu0 %v726, 32
    %v729 = vpop.permute.xlu0 %728
    %v731 = vmul.f32 %v713, %v729
    %733 = vrot.lane.b32.xlu0 %v731, 64
    %v734 = vpop.permute.xlu0 %733
    %737 = vrot.lane.b32.xlu0 %v602, 96
    %v738 = vpop.permute.xlu0 %737
    %v740 = vsel %vm212, %v734, %v738
    %v742 = vsel %vm279, %v740, 0
    %744 = vmatpush.msra.mxu0 0.0
    %745 = vmatpush.msra.mxu0 0.0
    %746 = vmatpush.msra.mxu0 0.0
    %747 = vmatpush.msra.mxu0 0.0
    %748 = vmatpush.msra.mxu0 0.0
    %749 = vmatpush.msra.mxu0 0.0
    %750 = vmatpush.msra.mxu0 0.0
    %751 = vmatpush.msra.mxu0 0.0
    %752 = vmatpush.msra.mxu0 %v202
    %753 = vmatpush.msra.mxu0 %v201
    %754 = vmatpush.msra.mxu0 %v200
    %755 = vmatpush.msra.mxu0 %v199
    %756 = vmatpush.msra.mxu0 %v198
    %757 = vmatpush.msra.mxu0 %v197
    %758 = vmatpush.msra.mxu0 %v196
    %759 = vmatpush.msra.mxu0 %v195
    %760 = vmatmul.f32.gmra.mxu0 %v742
    %v761 = vpop.f32.mrf.mxu0
    %v762 = vadd.f32 %v209, %v761
    %763 = vdwg.mxu0
    %v764 = vxor.u32 %v762, 2147483648
    %v765 = vmul.f32 %v764, 1.442695
    %v766 = vpow.pop %v765
    %v767 = vadd.f32 %v766, 1.0
    %v768 = vrcp.pop %v767
    %v769 = vmul.f32 %v767, %v768
    %v770 = vsub.f32 1.0, %v769
    %v771 = vmul.f32 %v768, %v770
    %v772 = vadd.f32 %v768, %v771
    %vm773 = vweird.f32 %v767
    %vm774 = vweird.f32 %v768
    %vm775 = vmor %vm773, %vm774
    %v776 = vsel %vm775, %v768, %v772
    %v777 = vand.u32 2147483647, %v767
    %vm778 = vcmp.eq.f32.partialorder %v777, 8.507059e+37
    %v779 = vand.u32 %v767, 2147483648
    %v780 = vor.u32 1.1754944e-38, %v779
    %v781 = vsel %vm778, %v780, %v776
    %v782 = vmul.f32 1.0, %v781
    %v783 = vtanh.pop %v762
    %v784 = vmul.f32 %v782, %v596
    %786 = vrot.lane.b32.xlu0 %v783, 32
    %v787 = vpop.permute.xlu0 %786
    %v789 = vmul.f32 %v782, %v787
    %791 = vrot.lane.b32.xlu0 %v789, 32
    %v792 = vpop.permute.xlu0 %791
    %v794 = vadd.f32 %v784, %v792
    %v795 = vtanh.pop %v794
    %797 = vrot.lane.b32.xlu0 %v795, 32
    %v798 = vpop.permute.xlu0 %797
    %v800 = vmul.f32 %v782, %v798
    %v801 = vld [vmem:[#allocation2 + $0x18] sm:$0xff]
    %v802 = vsel %vm212, %v666, 0
    %804 = vmatpush.msra.mxu0 0.0
    %805 = vmatpush.msra.mxu0 0.0
    %806 = vmatpush.msra.mxu0 0.0
    %807 = vmatpush.msra.mxu0 0.0
    %808 = vmatpush.msra.mxu0 0.0
    %809 = vmatpush.msra.mxu0 0.0
    %810 = vmatpush.msra.mxu0 0.0
    %811 = vmatpush.msra.mxu0 0.0
    %812 = vmatpush.msra.mxu0 0.0
    %813 = vmatpush.msra.mxu0 0.0
    %814 = vmatpush.msra.mxu0 0.0
    %815 = vmatpush.msra.mxu0 0.0
    %816 = vmatpush.msra.mxu0 %v186
    %817 = vmatpush.msra.mxu0 %v185
    %818 = vmatpush.msra.mxu0 %v184
    %819 = vmatpush.msra.mxu0 %v183
    %820 = vmatmul.f32.gmra.mxu0 %v802
    %v821 = vpop.f32.mrf.mxu0
    %v822 = vadd.f32 0.0, %v821
    %823 = vdwg.mxu0
    %v824 = vadd.f32 %v801, %v822
    %v825 = vxor.u32 %v824, 2147483648
    %v826 = vmul.f32 %v825, 1.442695
    %v827 = vpow.pop %v826
    %v828 = vadd.f32 %v827, 1.0
    %v829 = vrcp.pop %v828
    %v830 = vmul.f32 %v828, %v829
    %v831 = vsub.f32 1.0, %v830
    %v832 = vmul.f32 %v829, %v831
    %v833 = vadd.f32 %v829, %v832
    %vm834 = vweird.f32 %v828
    %vm835 = vweird.f32 %v829
    %vm836 = vmor %vm834, %vm835
    %v837 = vsel %vm836, %v829, %v833
    %v838 = vand.u32 2147483647, %v828
    %vm839 = vcmp.eq.f32.partialorder %v838, 8.507059e+37
    %v840 = vand.u32 %v828, 2147483648
    %v841 = vor.u32 1.1754944e-38, %v840
    %v842 = vsel %vm839, %v841, %v837
    %v843 = vmul.f32 1.0, %v842
    %v844 = vtanh.pop %v824
    %v845 = vmul.f32 %v843, %v657
    %847 = vrot.lane.b32.xlu0 %v844, 32
    %v848 = vpop.permute.xlu0 %847
    %v850 = vmul.f32 %v843, %v848
    %852 = vrot.lane.b32.xlu0 %v850, 32
    %v853 = vpop.permute.xlu0 %852
    %v855 = vadd.f32 %v845, %v853
    %v856 = vtanh.pop %v855
    %858 = vrot.lane.b32.xlu0 %v856, 32
    %v859 = vpop.permute.xlu0 %858
    %v861 = vmul.f32 %v843, %v859
    %863 = vrot.lane.b32.xlu0 %v861, 64
    %v864 = vpop.permute.xlu0 %863
    %866 = vrot.lane.b32.xlu0 %v731, 96
    %v867 = vpop.permute.xlu0 %866
    %v869 = vsel %vm212, %v864, %v867
    %v871 = vsel %vm279, %v869, 0
    %873 = vmatpush.msra.mxu0 0.0
    %874 = vmatpush.msra.mxu0 0.0
    %875 = vmatpush.msra.mxu0 0.0
    %876 = vmatpush.msra.mxu0 0.0
    %877 = vmatpush.msra.mxu0 0.0
    %878 = vmatpush.msra.mxu0 0.0
    %879 = vmatpush.msra.mxu0 0.0
    %880 = vmatpush.msra.mxu0 0.0
    %881 = vmatpush.msra.mxu0 %v194
    %882 = vmatpush.msra.mxu0 %v193
    %883 = vmatpush.msra.mxu0 %v192
    %884 = vmatpush.msra.mxu0 %v191
    %885 = vmatpush.msra.mxu0 %v190
    %886 = vmatpush.msra.mxu0 %v189
    %887 = vmatpush.msra.mxu0 %v188
    %888 = vmatpush.msra.mxu0 %v187
    %889 = vmatmul.f32.gmra.mxu0 %v871
    %v890 = vpop.f32.mrf.mxu0
    %v891 = vadd.f32 %v205, %v890
    %892 = vdwg.mxu0
    %v893 = vxor.u32 %v891, 2147483648
    %v894 = vmul.f32 %v893, 1.442695
    %v895 = vpow.pop %v894
    %v896 = vadd.f32 %v895, 1.0
    %v897 = vrcp.pop %v896
    %v898 = vmul.f32 %v896, %v897
    %v899 = vsub.f32 1.0, %v898
    %v900 = vmul.f32 %v897, %v899
    %v901 = vadd.f32 %v897, %v900
    %vm902 = vweird.f32 %v896
    %vm903 = vweird.f32 %v897
    %vm904 = vmor %vm902, %vm903
    %v905 = vsel %vm904, %v897, %v901
    %v906 = vand.u32 2147483647, %v896
    %vm907 = vcmp.eq.f32.partialorder %v906, 8.507059e+37
    %v908 = vand.u32 %v896, 2147483648
    %v909 = vor.u32 1.1754944e-38, %v908
    %v910 = vsel %vm907, %v909, %v905
    %v911 = vmul.f32 1.0, %v910
    %v912 = vtanh.pop %v891
    %v913 = vmul.f32 %v911, %v725
    %915 = vrot.lane.b32.xlu0 %v912, 32
    %v916 = vpop.permute.xlu0 %915
    %v918 = vmul.f32 %v911, %v916
    %920 = vrot.lane.b32.xlu0 %v918, 32
    %v921 = vpop.permute.xlu0 %920
    %v923 = vadd.f32 %v913, %v921
    %v924 = vtanh.pop %v923
    %926 = vrot.lane.b32.xlu0 %v924, 32
    %v927 = vpop.permute.xlu0 %926
    %v929 = vmul.f32 %v911, %v927
    %931 = vrot.lane.b32.xlu0 %v929, 64
    %v932 = vpop.permute.xlu0 %931
    %935 = vrot.lane.b32.xlu0 %v800, 96
    %v936 = vpop.permute.xlu0 %935
    %v938 = vsel %vm212, %v932, %v936
    %v940 = vsel %vm279, %v938, 0
    %942 = vmatpush.msra.mxu0 0.0
    %943 = vmatpush.msra.mxu0 0.0
    %944 = vmatpush.msra.mxu0 0.0
    %945 = vmatpush.msra.mxu0 0.0
    %946 = vmatpush.msra.mxu0 0.0
    %947 = vmatpush.msra.mxu0 0.0
    %948 = vmatpush.msra.mxu0 0.0
    %949 = vmatpush.msra.mxu0 0.0
    %950 = vmatpush.msra.mxu0 %v202
    %951 = vmatpush.msra.mxu0 %v201
    %952 = vmatpush.msra.mxu0 %v200
    %953 = vmatpush.msra.mxu0 %v199
    %954 = vmatpush.msra.mxu0 %v198
    %955 = vmatpush.msra.mxu0 %v197
    %956 = vmatpush.msra.mxu0 %v196
    %957 = vmatpush.msra.mxu0 %v195
    %958 = vmatmul.f32.gmra.mxu0 %v940
    %v959 = vpop.f32.mrf.mxu0
    %v960 = vadd.f32 %v209, %v959
    %961 = vdwg.mxu0
    %v962 = vxor.u32 %v960, 2147483648
    %v963 = vmul.f32 %v962, 1.442695
    %v964 = vpow.pop %v963
    %v965 = vadd.f32 %v964, 1.0
    %v966 = vrcp.pop %v965
    %v967 = vmul.f32 %v965, %v966
    %v968 = vsub.f32 1.0, %v967
    %v969 = vmul.f32 %v966, %v968
    %v970 = vadd.f32 %v966, %v969
    %vm971 = vweird.f32 %v965
    %vm972 = vweird.f32 %v966
    %vm973 = vmor %vm971, %vm972
    %v974 = vsel %vm973, %v966, %v970
    %v975 = vand.u32 2147483647, %v965
    %vm976 = vcmp.eq.f32.partialorder %v975, 8.507059e+37
    %v977 = vand.u32 %v965, 2147483648
    %v978 = vor.u32 1.1754944e-38, %v977
    %v979 = vsel %vm976, %v978, %v974
    %v980 = vmul.f32 1.0, %v979
    %v981 = vtanh.pop %v960
    %v982 = vmul.f32 %v980, %v794
    %984 = vrot.lane.b32.xlu0 %v981, 32
    %v985 = vpop.permute.xlu0 %984
    %v987 = vmul.f32 %v980, %v985
    %989 = vrot.lane.b32.xlu0 %v987, 32
    %v990 = vpop.permute.xlu0 %989
    %v992 = vadd.f32 %v982, %v990
    %v993 = vtanh.pop %v992
    %995 = vrot.lane.b32.xlu0 %v993, 32
    %v996 = vpop.permute.xlu0 %995
    %v998 = vmul.f32 %v980, %v996
    %v999 = vld [vmem:[#allocation2 + $0x20] sm:$0xff]
    %v1000 = vsel %vm212, %v864, 0
    %1002 = vmatpush.msra.mxu0 0.0
    %1003 = vmatpush.msra.mxu0 0.0
    %1004 = vmatpush.msra.mxu0 0.0
    %1005 = vmatpush.msra.mxu0 0.0
    %1006 = vmatpush.msra.mxu0 0.0
    %1007 = vmatpush.msra.mxu0 0.0
    %1008 = vmatpush.msra.mxu0 0.0
    %1009 = vmatpush.msra.mxu0 0.0
    %1010 = vmatpush.msra.mxu0 0.0
    %1011 = vmatpush.msra.mxu0 0.0
    %1012 = vmatpush.msra.mxu0 0.0
    %1013 = vmatpush.msra.mxu0 0.0
    %1014 = vmatpush.msra.mxu0 %v186
    %1015 = vmatpush.msra.mxu0 %v185
    %1016 = vmatpush.msra.mxu0 %v184
    %1017 = vmatpush.msra.mxu0 %v183
    %1018 = vmatmul.f32.gmra.mxu0 %v1000
    %v1019 = vpop.f32.mrf.mxu0
    %v1020 = vadd.f32 0.0, %v1019
    %1021 = vdwg.mxu0
    %v1022 = vadd.f32 %v999, %v1020
    %v1023 = vxor.u32 %v1022, 2147483648
    %v1024 = vmul.f32 %v1023, 1.442695
    %v1025 = vpow.pop %v1024
    %v1026 = vadd.f32 %v1025, 1.0
    %v1027 = vrcp.pop %v1026
    %v1028 = vmul.f32 %v1026, %v1027
    %v1029 = vsub.f32 1.0, %v1028
    %v1030 = vmul.f32 %v1027, %v1029
    %v1031 = vadd.f32 %v1027, %v1030
    %vm1032 = vweird.f32 %v1026
    %vm1033 = vweird.f32 %v1027
    %vm1034 = vmor %vm1032, %vm1033
    %v1035 = vsel %vm1034, %v1027, %v1031
    %v1036 = vand.u32 2147483647, %v1026
    %vm1037 = vcmp.eq.f32.partialorder %v1036, 8.507059e+37
    %v1038 = vand.u32 %v1026, 2147483648
    %v1039 = vor.u32 1.1754944e-38, %v1038
    %v1040 = vsel %vm1037, %v1039, %v1035
    %v1041 = vmul.f32 1.0, %v1040
    %v1042 = vtanh.pop %v1022
    %v1043 = vmul.f32 %v1041, %v855
    %1045 = vrot.lane.b32.xlu0 %v1042, 32
    %v1046 = vpop.permute.xlu0 %1045
    %v1048 = vmul.f32 %v1041, %v1046
    %1050 = vrot.lane.b32.xlu0 %v1048, 32
    %v1051 = vpop.permute.xlu0 %1050
    %v1053 = vadd.f32 %v1043, %v1051
    %v1054 = vtanh.pop %v1053
    %1056 = vrot.lane.b32.xlu0 %v1054, 32
    %v1057 = vpop.permute.xlu0 %1056
    %v1059 = vmul.f32 %v1041, %v1057
    %1061 = vrot.lane.b32.xlu0 %v1059, 64
    %v1062 = vpop.permute.xlu0 %1061
    %1064 = vrot.lane.b32.xlu0 %v929, 96
    %v1065 = vpop.permute.xlu0 %1064
    %v1067 = vsel %vm212, %v1062, %v1065
    %v1069 = vsel %vm279, %v1067, 0
    %1071 = vmatpush.msra.mxu0 0.0
    %1072 = vmatpush.msra.mxu0 0.0
    %1073 = vmatpush.msra.mxu0 0.0
    %1074 = vmatpush.msra.mxu0 0.0
    %1075 = vmatpush.msra.mxu0 0.0
    %1076 = vmatpush.msra.mxu0 0.0
    %1077 = vmatpush.msra.mxu0 0.0
    %1078 = vmatpush.msra.mxu0 0.0
    %1079 = vmatpush.msra.mxu0 %v194
    %1080 = vmatpush.msra.mxu0 %v193
    %1081 = vmatpush.msra.mxu0 %v192
    %1082 = vmatpush.msra.mxu0 %v191
    %1083 = vmatpush.msra.mxu0 %v190
    %1084 = vmatpush.msra.mxu0 %v189
    %1085 = vmatpush.msra.mxu0 %v188
    %1086 = vmatpush.msra.mxu0 %v187
    %1087 = vmatmul.f32.gmra.mxu0 %v1069
    %v1088 = vpop.f32.mrf.mxu0
    %v1089 = vadd.f32 %v205, %v1088
    %1090 = vdwg.mxu0
    %v1091 = vxor.u32 %v1089, 2147483648
    %v1092 = vmul.f32 %v1091, 1.442695
    %v1093 = vpow.pop %v1092
    %v1094 = vadd.f32 %v1093, 1.0
    %v1095 = vrcp.pop %v1094
    %v1096 = vmul.f32 %v1094, %v1095
    %v1097 = vsub.f32 1.0, %v1096
    %v1098 = vmul.f32 %v1095, %v1097
    %v1099 = vadd.f32 %v1095, %v1098
    %vm1100 = vweird.f32 %v1094
    %vm1101 = vweird.f32 %v1095
    %vm1102 = vmor %vm1100, %vm1101
    %v1103 = vsel %vm1102, %v1095, %v1099
    %v1104 = vand.u32 2147483647, %v1094
    %vm1105 = vcmp.eq.f32.partialorder %v1104, 8.507059e+37
    %v1106 = vand.u32 %v1094, 2147483648
    %v1107 = vor.u32 1.1754944e-38, %v1106
    %v1108 = vsel %vm1105, %v1107, %v1103
    %v1109 = vmul.f32 1.0, %v1108
    %v1110 = vtanh.pop %v1089
    %v1111 = vmul.f32 %v1109, %v923
    %1113 = vrot.lane.b32.xlu0 %v1110, 32
    %v1114 = vpop.permute.xlu0 %1113
    %v1116 = vmul.f32 %v1109, %v1114
    %1118 = vrot.lane.b32.xlu0 %v1116, 32
    %v1119 = vpop.permute.xlu0 %1118
    %v1121 = vadd.f32 %v1111, %v1119
    %v1122 = vtanh.pop %v1121
    %1124 = vrot.lane.b32.xlu0 %v1122, 32
    %v1125 = vpop.permute.xlu0 %1124
    %v1127 = vmul.f32 %v1109, %v1125
    %1129 = vrot.lane.b32.xlu0 %v1127, 64
    %v1130 = vpop.permute.xlu0 %1129
    %1133 = vrot.lane.b32.xlu0 %v998, 96
    %v1134 = vpop.permute.xlu0 %1133
    %v1136 = vsel %vm212, %v1130, %v1134
    %v1138 = vsel %vm279, %v1136, 0
    %1140 = vmatpush.msra.mxu0 0.0
    %1141 = vmatpush.msra.mxu0 0.0
    %1142 = vmatpush.msra.mxu0 0.0
    %1143 = vmatpush.msra.mxu0 0.0
    %1144 = vmatpush.msra.mxu0 0.0
    %1145 = vmatpush.msra.mxu0 0.0
    %1146 = vmatpush.msra.mxu0 0.0
    %1147 = vmatpush.msra.mxu0 0.0
    %1148 = vmatpush.msra.mxu0 %v202
    %1149 = vmatpush.msra.mxu0 %v201
    %1150 = vmatpush.msra.mxu0 %v200
    %1151 = vmatpush.msra.mxu0 %v199
    %1152 = vmatpush.msra.mxu0 %v198
    %1153 = vmatpush.msra.mxu0 %v197
    %1154 = vmatpush.msra.mxu0 %v196
    %1155 = vmatpush.msra.mxu0 %v195
    %1156 = vmatmul.f32.gmra.mxu0 %v1138
    %v1157 = vpop.f32.mrf.mxu0
    %v1158 = vadd.f32 %v209, %v1157
    %1159 = vdwg.mxu0
    %v1160 = vxor.u32 %v1158, 2147483648
    %v1161 = vmul.f32 %v1160, 1.442695
    %v1162 = vpow.pop %v1161
    %v1163 = vadd.f32 %v1162, 1.0
    %v1164 = vrcp.pop %v1163
    %v1165 = vmul.f32 %v1163, %v1164
    %v1166 = vsub.f32 1.0, %v1165
    %v1167 = vmul.f32 %v1164, %v1166
    %v1168 = vadd.f32 %v1164, %v1167
    %vm1169 = vweird.f32 %v1163
    %vm1170 = vweird.f32 %v1164
    %vm1171 = vmor %vm1169, %vm1170
    %v1172 = vsel %vm1171, %v1164, %v1168
    %v1173 = vand.u32 2147483647, %v1163
    %vm1174 = vcmp.eq.f32.partialorder %v1173, 8.507059e+37
    %v1175 = vand.u32 %v1163, 2147483648
    %v1176 = vor.u32 1.1754944e-38, %v1175
    %v1177 = vsel %vm1174, %v1176, %v1172
    %v1178 = vmul.f32 1.0, %v1177
    %v1179 = vtanh.pop %v1158
    %v1180 = vmul.f32 %v1178, %v992
    %1182 = vrot.lane.b32.xlu0 %v1179, 32
    %v1183 = vpop.permute.xlu0 %1182
    %v1185 = vmul.f32 %v1178, %v1183
    %1187 = vrot.lane.b32.xlu0 %v1185, 32
    %v1188 = vpop.permute.xlu0 %1187
    %v1190 = vadd.f32 %v1180, %v1188
    %v1191 = vtanh.pop %v1190
    %1193 = vrot.lane.b32.xlu0 %v1191, 32
    %v1194 = vpop.permute.xlu0 %1193
    %v1196 = vmul.f32 %v1178, %v1194
    %v1197 = vld [vmem:[#allocation2 + $0x28] sm:$0xff]
    %v1198 = vsel %vm212, %v1062, 0
    %1200 = vmatpush.msra.mxu0 0.0
    %1201 = vmatpush.msra.mxu0 0.0
    %1202 = vmatpush.msra.mxu0 0.0
    %1203 = vmatpush.msra.mxu0 0.0
    %1204 = vmatpush.msra.mxu0 0.0
    %1205 = vmatpush.msra.mxu0 0.0
    %1206 = vmatpush.msra.mxu0 0.0
    %1207 = vmatpush.msra.mxu0 0.0
    %1208 = vmatpush.msra.mxu0 0.0
    %1209 = vmatpush.msra.mxu0 0.0
    %1210 = vmatpush.msra.mxu0 0.0
    %1211 = vmatpush.msra.mxu0 0.0
    %1212 = vmatpush.msra.mxu0 %v186
    %1213 = vmatpush.msra.mxu0 %v185
    %1214 = vmatpush.msra.mxu0 %v184
    %1215 = vmatpush.msra.mxu0 %v183
    %1216 = vmatmul.f32.gmra.mxu0 %v1198
    %v1217 = vpop.f32.mrf.mxu0
    %v1218 = vadd.f32 0.0, %v1217
    %1219 = vdwg.mxu0
    %v1220 = vadd.f32 %v1197, %v1218
    %v1221 = vxor.u32 %v1220, 2147483648
    %v1222 = vmul.f32 %v1221, 1.442695
    %v1223 = vpow.pop %v1222
    %v1224 = vadd.f32 %v1223, 1.0
    %v1225 = vrcp.pop %v1224
    %v1226 = vmul.f32 %v1224, %v1225
    %v1227 = vsub.f32 1.0, %v1226
    %v1228 = vmul.f32 %v1225, %v1227
    %v1229 = vadd.f32 %v1225, %v1228
    %vm1230 = vweird.f32 %v1224
    %vm1231 = vweird.f32 %v1225
    %vm1232 = vmor %vm1230, %vm1231
    %v1233 = vsel %vm1232, %v1225, %v1229
    %v1234 = vand.u32 2147483647, %v1224
    %vm1235 = vcmp.eq.f32.partialorder %v1234, 8.507059e+37
    %v1236 = vand.u32 %v1224, 2147483648
    %v1237 = vor.u32 1.1754944e-38, %v1236
    %v1238 = vsel %vm1235, %v1237, %v1233
    %v1239 = vmul.f32 1.0, %v1238
    %v1240 = vtanh.pop %v1220
    %v1241 = vmul.f32 %v1239, %v1053
    %1243 = vrot.lane.b32.xlu0 %v1240, 32
    %v1244 = vpop.permute.xlu0 %1243
    %v1246 = vmul.f32 %v1239, %v1244
    %1248 = vrot.lane.b32.xlu0 %v1246, 32
    %v1249 = vpop.permute.xlu0 %1248
    %v1251 = vadd.f32 %v1241, %v1249
    %v1252 = vtanh.pop %v1251
    %1254 = vrot.lane.b32.xlu0 %v1252, 32
    %v1255 = vpop.permute.xlu0 %1254
    %v1257 = vmul.f32 %v1239, %v1255
    %1259 = vrot.lane.b32.xlu0 %v1257, 64
    %v1260 = vpop.permute.xlu0 %1259
    %1262 = vrot.lane.b32.xlu0 %v1127, 96
    %v1263 = vpop.permute.xlu0 %1262
    %v1265 = vsel %vm212, %v1260, %v1263
    %v1267 = vsel %vm279, %v1265, 0
    %1269 = vmatpush.msra.mxu0 0.0
    %1270 = vmatpush.msra.mxu0 0.0
    %1271 = vmatpush.msra.mxu0 0.0
    %1272 = vmatpush.msra.mxu0 0.0
    %1273 = vmatpush.msra.mxu0 0.0
    %1274 = vmatpush.msra.mxu0 0.0
    %1275 = vmatpush.msra.mxu0 0.0
    %1276 = vmatpush.msra.mxu0 0.0
    %1277 = vmatpush.msra.mxu0 %v194
    %1278 = vmatpush.msra.mxu0 %v193
    %1279 = vmatpush.msra.mxu0 %v192
    %1280 = vmatpush.msra.mxu0 %v191
    %1281 = vmatpush.msra.mxu0 %v190
    %1282 = vmatpush.msra.mxu0 %v189
    %1283 = vmatpush.msra.mxu0 %v188
    %1284 = vmatpush.msra.mxu0 %v187
    %1285 = vmatmul.f32.gmra.mxu0 %v1267
    %v1286 = vpop.f32.mrf.mxu0
    %v1287 = vadd.f32 %v205, %v1286
    %1288 = vdwg.mxu0
    %v1289 = vxor.u32 %v1287, 2147483648
    %v1290 = vmul.f32 %v1289, 1.442695
    %v1291 = vpow.pop %v1290
    %v1292 = vadd.f32 %v1291, 1.0
    %v1293 = vrcp.pop %v1292
    %v1294 = vmul.f32 %v1292, %v1293
    %v1295 = vsub.f32 1.0, %v1294
    %v1296 = vmul.f32 %v1293, %v1295
    %v1297 = vadd.f32 %v1293, %v1296
    %vm1298 = vweird.f32 %v1292
    %vm1299 = vweird.f32 %v1293
    %vm1300 = vmor %vm1298, %vm1299
    %v1301 = vsel %vm1300, %v1293, %v1297
    %v1302 = vand.u32 2147483647, %v1292
    %vm1303 = vcmp.eq.f32.partialorder %v1302, 8.507059e+37
    %v1304 = vand.u32 %v1292, 2147483648
    %v1305 = vor.u32 1.1754944e-38, %v1304
    %v1306 = vsel %vm1303, %v1305, %v1301
    %v1307 = vmul.f32 1.0, %v1306
    %v1308 = vtanh.pop %v1287
    %v1309 = vmul.f32 %v1307, %v1121
    %1311 = vrot.lane.b32.xlu0 %v1308, 32
    %v1312 = vpop.permute.xlu0 %1311
    %v1314 = vmul.f32 %v1307, %v1312
    %1316 = vrot.lane.b32.xlu0 %v1314, 32
    %v1317 = vpop.permute.xlu0 %1316
    %v1319 = vadd.f32 %v1309, %v1317
    %v1320 = vtanh.pop %v1319
    %1322 = vrot.lane.b32.xlu0 %v1320, 32
    %v1323 = vpop.permute.xlu0 %1322
    %v1325 = vmul.f32 %v1307, %v1323
    %1327 = vrot.lane.b32.xlu0 %v1325, 64
    %v1328 = vpop.permute.xlu0 %1327
    %1331 = vrot.lane.b32.xlu0 %v1196, 96
    %v1332 = vpop.permute.xlu0 %1331
    %v1334 = vsel %vm212, %v1328, %v1332
    %v1336 = vsel %vm279, %v1334, 0
    %1338 = vmatpush.msra.mxu0 0.0
    %1339 = vmatpush.msra.mxu0 0.0
    %1340 = vmatpush.msra.mxu0 0.0
    %1341 = vmatpush.msra.mxu0 0.0
    %1342 = vmatpush.msra.mxu0 0.0
    %1343 = vmatpush.msra.mxu0 0.0
    %1344 = vmatpush.msra.mxu0 0.0
    %1345 = vmatpush.msra.mxu0 0.0
    %1346 = vmatpush.msra.mxu0 %v202
    %1347 = vmatpush.msra.mxu0 %v201
    %1348 = vmatpush.msra.mxu0 %v200
    %1349 = vmatpush.msra.mxu0 %v199
    %1350 = vmatpush.msra.mxu0 %v198
    %1351 = vmatpush.msra.mxu0 %v197
    %1352 = vmatpush.msra.mxu0 %v196
    %1353 = vmatpush.msra.mxu0 %v195
    %1354 = vmatmul.f32.gmra.mxu0 %v1336
    %v1355 = vpop.f32.mrf.mxu0
    %v1356 = vadd.f32 %v209, %v1355
    %1357 = vdwg.mxu0
    %v1358 = vxor.u32 %v1356, 2147483648
    %v1359 = vmul.f32 %v1358, 1.442695
    %v1360 = vpow.pop %v1359
    %v1361 = vadd.f32 %v1360, 1.0
    %v1362 = vrcp.pop %v1361
    %v1363 = vmul.f32 %v1361, %v1362
    %v1364 = vsub.f32 1.0, %v1363
    %v1365 = vmul.f32 %v1362, %v1364
    %v1366 = vadd.f32 %v1362, %v1365
    %vm1367 = vweird.f32 %v1361
    %vm1368 = vweird.f32 %v1362
    %vm1369 = vmor %vm1367, %vm1368
    %v1370 = vsel %vm1369, %v1362, %v1366
    %v1371 = vand.u32 2147483647, %v1361
    %vm1372 = vcmp.eq.f32.partialorder %v1371, 8.507059e+37
    %v1373 = vand.u32 %v1361, 2147483648
    %v1374 = vor.u32 1.1754944e-38, %v1373
    %v1375 = vsel %vm1372, %v1374, %v1370
    %v1376 = vmul.f32 1.0, %v1375
    %v1377 = vtanh.pop %v1356
    %v1378 = vmul.f32 %v1376, %v1190
    %1380 = vrot.lane.b32.xlu0 %v1377, 32
    %v1381 = vpop.permute.xlu0 %1380
    %v1383 = vmul.f32 %v1376, %v1381
    %1385 = vrot.lane.b32.xlu0 %v1383, 32
    %v1386 = vpop.permute.xlu0 %1385
    %v1388 = vadd.f32 %v1378, %v1386
    %v1389 = vtanh.pop %v1388
    %1391 = vrot.lane.b32.xlu0 %v1389, 32
    %v1392 = vpop.permute.xlu0 %1391
    %v1394 = vmul.f32 %v1376, %v1392
    %v1395 = vld [vmem:[#allocation2 + $0x30] sm:$0xff]
    %v1396 = vsel %vm212, %v1260, 0
    %1398 = vmatpush.msra.mxu0 0.0
    %1399 = vmatpush.msra.mxu0 0.0
    %1400 = vmatpush.msra.mxu0 0.0
    %1401 = vmatpush.msra.mxu0 0.0
    %1402 = vmatpush.msra.mxu0 0.0
    %1403 = vmatpush.msra.mxu0 0.0
    %1404 = vmatpush.msra.mxu0 0.0
    %1405 = vmatpush.msra.mxu0 0.0
    %1406 = vmatpush.msra.mxu0 0.0
    %1407 = vmatpush.msra.mxu0 0.0
    %1408 = vmatpush.msra.mxu0 0.0
    %1409 = vmatpush.msra.mxu0 0.0
    %1410 = vmatpush.msra.mxu0 %v186
    %1411 = vmatpush.msra.mxu0 %v185
    %1412 = vmatpush.msra.mxu0 %v184
    %1413 = vmatpush.msra.mxu0 %v183
    %1414 = vmatmul.f32.gmra.mxu0 %v1396
    %v1415 = vpop.f32.mrf.mxu0
    %v1416 = vadd.f32 0.0, %v1415
    %1417 = vdwg.mxu0
    %v1418 = vadd.f32 %v1395, %v1416
    %v1419 = vxor.u32 %v1418, 2147483648
    %v1420 = vmul.f32 %v1419, 1.442695
    %v1421 = vpow.pop %v1420
    %v1422 = vadd.f32 %v1421, 1.0
    %v1423 = vrcp.pop %v1422
    %v1424 = vmul.f32 %v1422, %v1423
    %v1425 = vsub.f32 1.0, %v1424
    %v1426 = vmul.f32 %v1423, %v1425
    %v1427 = vadd.f32 %v1423, %v1426
    %vm1428 = vweird.f32 %v1422
    %vm1429 = vweird.f32 %v1423
    %vm1430 = vmor %vm1428, %vm1429
    %v1431 = vsel %vm1430, %v1423, %v1427
    %v1432 = vand.u32 2147483647, %v1422
    %vm1433 = vcmp.eq.f32.partialorder %v1432, 8.507059e+37
    %v1434 = vand.u32 %v1422, 2147483648
    %v1435 = vor.u32 1.1754944e-38, %v1434
    %v1436 = vsel %vm1433, %v1435, %v1431
    %v1437 = vmul.f32 1.0, %v1436
    %v1438 = vtanh.pop %v1418
    %v1439 = vmul.f32 %v1437, %v1251
    %1441 = vrot.lane.b32.xlu0 %v1438, 32
    %v1442 = vpop.permute.xlu0 %1441
    %v1444 = vmul.f32 %v1437, %v1442
    %1446 = vrot.lane.b32.xlu0 %v1444, 32
    %v1447 = vpop.permute.xlu0 %1446
    %v1449 = vadd.f32 %v1439, %v1447
    %v1450 = vtanh.pop %v1449
    %1452 = vrot.lane.b32.xlu0 %v1450, 32
    %v1453 = vpop.permute.xlu0 %1452
    %v1455 = vmul.f32 %v1437, %v1453
    %1457 = vrot.lane.b32.xlu0 %v1455, 64
    %v1458 = vpop.permute.xlu0 %1457
    %1460 = vrot.lane.b32.xlu0 %v1325, 96
    %v1461 = vpop.permute.xlu0 %1460
    %v1463 = vsel %vm212, %v1458, %v1461
    %v1465 = vsel %vm279, %v1463, 0
    %1467 = vmatpush.msra.mxu0 0.0
    %1468 = vmatpush.msra.mxu0 0.0
    %1469 = vmatpush.msra.mxu0 0.0
    %1470 = vmatpush.msra.mxu0 0.0
    %1471 = vmatpush.msra.mxu0 0.0
    %1472 = vmatpush.msra.mxu0 0.0
    %1473 = vmatpush.msra.mxu0 0.0
    %1474 = vmatpush.msra.mxu0 0.0
    %1475 = vmatpush.msra.mxu0 %v194
    %1476 = vmatpush.msra.mxu0 %v193
    %1477 = vmatpush.msra.mxu0 %v192
    %1478 = vmatpush.msra.mxu0 %v191
    %1479 = vmatpush.msra.mxu0 %v190
    %1480 = vmatpush.msra.mxu0 %v189
    %1481 = vmatpush.msra.mxu0 %v188
    %1482 = vmatpush.msra.mxu0 %v187
    %1483 = vmatmul.f32.gmra.mxu0 %v1465
    %v1484 = vpop.f32.mrf.mxu0
    %v1485 = vadd.f32 %v205, %v1484
    %1486 = vdwg.mxu0
    %v1487 = vxor.u32 %v1485, 2147483648
    %v1488 = vmul.f32 %v1487, 1.442695
    %v1489 = vpow.pop %v1488
    %v1490 = vadd.f32 %v1489, 1.0
    %v1491 = vrcp.pop %v1490
    %v1492 = vmul.f32 %v1490, %v1491
    %v1493 = vsub.f32 1.0, %v1492
    %v1494 = vmul.f32 %v1491, %v1493
    %v1495 = vadd.f32 %v1491, %v1494
    %vm1496 = vweird.f32 %v1490
    %vm1497 = vweird.f32 %v1491
    %vm1498 = vmor %vm1496, %vm1497
    %v1499 = vsel %vm1498, %v1491, %v1495
    %v1500 = vand.u32 2147483647, %v1490
    %vm1501 = vcmp.eq.f32.partialorder %v1500, 8.507059e+37
    %v1502 = vand.u32 %v1490, 2147483648
    %v1503 = vor.u32 1.1754944e-38, %v1502
    %v1504 = vsel %vm1501, %v1503, %v1499
    %v1505 = vmul.f32 1.0, %v1504
    %v1506 = vtanh.pop %v1485
    %v1507 = vmul.f32 %v1505, %v1319
    %1509 = vrot.lane.b32.xlu0 %v1506, 32
    %v1510 = vpop.permute.xlu0 %1509
    %v1512 = vmul.f32 %v1505, %v1510
    %1514 = vrot.lane.b32.xlu0 %v1512, 32
    %v1515 = vpop.permute.xlu0 %1514
    %v1517 = vadd.f32 %v1507, %v1515
    %v1518 = vtanh.pop %v1517
    %1520 = vrot.lane.b32.xlu0 %v1518, 32
    %v1521 = vpop.permute.xlu0 %1520
    %v1523 = vmul.f32 %v1505, %v1521
    %1525 = vrot.lane.b32.xlu0 %v1523, 64
    %v1526 = vpop.permute.xlu0 %1525
    %1529 = vrot.lane.b32.xlu0 %v1394, 96
    %v1530 = vpop.permute.xlu0 %1529
    %v1532 = vsel %vm212, %v1526, %v1530
    %v1534 = vsel %vm279, %v1532, 0
    %1536 = vmatpush.msra.mxu0 0.0
    %1537 = vmatpush.msra.mxu0 0.0
    %1538 = vmatpush.msra.mxu0 0.0
    %1539 = vmatpush.msra.mxu0 0.0
    %1540 = vmatpush.msra.mxu0 0.0
    %1541 = vmatpush.msra.mxu0 0.0
    %1542 = vmatpush.msra.mxu0 0.0
    %1543 = vmatpush.msra.mxu0 0.0
    %1544 = vmatpush.msra.mxu0 %v202
    %1545 = vmatpush.msra.mxu0 %v201
    %1546 = vmatpush.msra.mxu0 %v200
    %1547 = vmatpush.msra.mxu0 %v199
    %1548 = vmatpush.msra.mxu0 %v198
    %1549 = vmatpush.msra.mxu0 %v197
    %1550 = vmatpush.msra.mxu0 %v196
    %1551 = vmatpush.msra.mxu0 %v195
    %1552 = vmatmul.f32.gmra.mxu0 %v1534
    %v1553 = vpop.f32.mrf.mxu0
    %v1554 = vadd.f32 %v209, %v1553
    %1555 = vdwg.mxu0
    %v1556 = vxor.u32 %v1554, 2147483648
    %v1557 = vmul.f32 %v1556, 1.442695
    %v1558 = vpow.pop %v1557
    %v1559 = vadd.f32 %v1558, 1.0
    %v1560 = vrcp.pop %v1559
    %v1561 = vmul.f32 %v1559, %v1560
    %v1562 = vsub.f32 1.0, %v1561
    %v1563 = vmul.f32 %v1560, %v1562
    %v1564 = vadd.f32 %v1560, %v1563
    %vm1565 = vweird.f32 %v1559
    %vm1566 = vweird.f32 %v1560
    %vm1567 = vmor %vm1565, %vm1566
    %v1568 = vsel %vm1567, %v1560, %v1564
    %v1569 = vand.u32 2147483647, %v1559
    %vm1570 = vcmp.eq.f32.partialorder %v1569, 8.507059e+37
    %v1571 = vand.u32 %v1559, 2147483648
    %v1572 = vor.u32 1.1754944e-38, %v1571
    %v1573 = vsel %vm1570, %v1572, %v1568
    %v1574 = vmul.f32 1.0, %v1573
    %v1575 = vtanh.pop %v1554
    %v1576 = vmul.f32 %v1574, %v1388
    %1578 = vrot.lane.b32.xlu0 %v1575, 32
    %v1579 = vpop.permute.xlu0 %1578
    %v1581 = vmul.f32 %v1574, %v1579
    %1583 = vrot.lane.b32.xlu0 %v1581, 32
    %v1584 = vpop.permute.xlu0 %1583
    %v1586 = vadd.f32 %v1576, %v1584
    %v1587 = vtanh.pop %v1586
    %1589 = vrot.lane.b32.xlu0 %v1587, 32
    %v1590 = vpop.permute.xlu0 %1589
    %v1592 = vmul.f32 %v1574, %v1590
    %v1593 = vld [vmem:[#allocation2 + $0x38] sm:$0xff]
    %v1594 = vsel %vm212, %v1458, 0
    %1596 = vmatpush.msra.mxu0 0.0
    %1597 = vmatpush.msra.mxu0 0.0
    %1598 = vmatpush.msra.mxu0 0.0
    %1599 = vmatpush.msra.mxu0 0.0
    %1600 = vmatpush.msra.mxu0 0.0
    %1601 = vmatpush.msra.mxu0 0.0
    %1602 = vmatpush.msra.mxu0 0.0
    %1603 = vmatpush.msra.mxu0 0.0
    %1604 = vmatpush.msra.mxu0 0.0
    %1605 = vmatpush.msra.mxu0 0.0
    %1606 = vmatpush.msra.mxu0 0.0
    %1607 = vmatpush.msra.mxu0 0.0
    %1608 = vmatpush.msra.mxu0 %v186
    %1609 = vmatpush.msra.mxu0 %v185
    %1610 = vmatpush.msra.mxu0 %v184
    %1611 = vmatpush.msra.mxu0 %v183
    %1612 = vmatmul.f32.gmra.mxu0 %v1594
    %v1613 = vpop.f32.mrf.mxu0
    %v1614 = vadd.f32 0.0, %v1613
    %1615 = vdwg.mxu0
    %v1616 = vadd.f32 %v1593, %v1614
    %v1617 = vxor.u32 %v1616, 2147483648
    %v1618 = vmul.f32 %v1617, 1.442695
    %v1619 = vpow.pop %v1618
    %v1620 = vadd.f32 %v1619, 1.0
    %v1621 = vrcp.pop %v1620
    %v1622 = vmul.f32 %v1620, %v1621
    %v1623 = vsub.f32 1.0, %v1622
    %v1624 = vmul.f32 %v1621, %v1623
    %v1625 = vadd.f32 %v1621, %v1624
    %vm1626 = vweird.f32 %v1620
    %vm1627 = vweird.f32 %v1621
    %vm1628 = vmor %vm1626, %vm1627
    %v1629 = vsel %vm1628, %v1621, %v1625
    %v1630 = vand.u32 2147483647, %v1620
    %vm1631 = vcmp.eq.f32.partialorder %v1630, 8.507059e+37
    %v1632 = vand.u32 %v1620, 2147483648
    %v1633 = vor.u32 1.1754944e-38, %v1632
    %v1634 = vsel %vm1631, %v1633, %v1629
    %v1635 = vmul.f32 1.0, %v1634
    %v1636 = vtanh.pop %v1616
    %v1637 = vmul.f32 %v1635, %v1449
    %1639 = vrot.lane.b32.xlu0 %v1636, 32
    %v1640 = vpop.permute.xlu0 %1639
    %v1642 = vmul.f32 %v1635, %v1640
    %1644 = vrot.lane.b32.xlu0 %v1642, 32
    %v1645 = vpop.permute.xlu0 %1644
    %v1647 = vadd.f32 %v1637, %v1645
    %v1648 = vtanh.pop %v1647
    %1650 = vrot.lane.b32.xlu0 %v1648, 32
    %v1651 = vpop.permute.xlu0 %1650
    %v1653 = vmul.f32 %v1635, %v1651
    %1655 = vrot.lane.b32.xlu0 %v1653, 64
    %v1656 = vpop.permute.xlu0 %1655
    %1658 = vrot.lane.b32.xlu0 %v1523, 96
    %v1659 = vpop.permute.xlu0 %1658
    %v1661 = vsel %vm212, %v1656, %v1659
    %v1663 = vsel %vm279, %v1661, 0
    %1665 = vmatpush.msra.mxu0 0.0
    %1666 = vmatpush.msra.mxu0 0.0
    %1667 = vmatpush.msra.mxu0 0.0
    %1668 = vmatpush.msra.mxu0 0.0
    %1669 = vmatpush.msra.mxu0 0.0
    %1670 = vmatpush.msra.mxu0 0.0
    %1671 = vmatpush.msra.mxu0 0.0
    %1672 = vmatpush.msra.mxu0 0.0
    %1673 = vmatpush.msra.mxu0 %v194
    %1674 = vmatpush.msra.mxu0 %v193
    %1675 = vmatpush.msra.mxu0 %v192
    %1676 = vmatpush.msra.mxu0 %v191
    %1677 = vmatpush.msra.mxu0 %v190
    %1678 = vmatpush.msra.mxu0 %v189
    %1679 = vmatpush.msra.mxu0 %v188
    %1680 = vmatpush.msra.mxu0 %v187
    %1681 = vmatmul.f32.gmra.mxu0 %v1663
    %v1682 = vpop.f32.mrf.mxu0
    %v1683 = vadd.f32 %v205, %v1682
    %1684 = vdwg.mxu0
    %v1685 = vxor.u32 %v1683, 2147483648
    %v1686 = vmul.f32 %v1685, 1.442695
    %v1687 = vpow.pop %v1686
    %v1688 = vadd.f32 %v1687, 1.0
    %v1689 = vrcp.pop %v1688
    %v1690 = vmul.f32 %v1688, %v1689
    %v1691 = vsub.f32 1.0, %v1690
    %v1692 = vmul.f32 %v1689, %v1691
    %v1693 = vadd.f32 %v1689, %v1692
    %vm1694 = vweird.f32 %v1688
    %vm1695 = vweird.f32 %v1689
    %vm1696 = vmor %vm1694, %vm1695
    %v1697 = vsel %vm1696, %v1689, %v1693
    %v1698 = vand.u32 2147483647, %v1688
    %vm1699 = vcmp.eq.f32.partialorder %v1698, 8.507059e+37
    %v1700 = vand.u32 %v1688, 2147483648
    %v1701 = vor.u32 1.1754944e-38, %v1700
    %v1702 = vsel %vm1699, %v1701, %v1697
    %v1703 = vmul.f32 1.0, %v1702
    %v1704 = vtanh.pop %v1683
    %v1705 = vmul.f32 %v1703, %v1517
    %1707 = vrot.lane.b32.xlu0 %v1704, 32
    %v1708 = vpop.permute.xlu0 %1707
    %v1710 = vmul.f32 %v1703, %v1708
    %1712 = vrot.lane.b32.xlu0 %v1710, 32
    %v1713 = vpop.permute.xlu0 %1712
    %v1715 = vadd.f32 %v1705, %v1713
    %v1716 = vtanh.pop %v1715
    %1718 = vrot.lane.b32.xlu0 %v1716, 32
    %v1719 = vpop.permute.xlu0 %1718
    %v1721 = vmul.f32 %v1703, %v1719
    %1723 = vrot.lane.b32.xlu0 %v1721, 64
    %v1724 = vpop.permute.xlu0 %1723
    %1727 = vrot.lane.b32.xlu0 %v1592, 96
    %v1728 = vpop.permute.xlu0 %1727
    %v1730 = vsel %vm212, %v1724, %v1728
    %v1732 = vsel %vm279, %v1730, 0
    %1734 = vmatpush.msra.mxu0 0.0
    %1735 = vmatpush.msra.mxu0 0.0
    %1736 = vmatpush.msra.mxu0 0.0
    %1737 = vmatpush.msra.mxu0 0.0
    %1738 = vmatpush.msra.mxu0 0.0
    %1739 = vmatpush.msra.mxu0 0.0
    %1740 = vmatpush.msra.mxu0 0.0
    %1741 = vmatpush.msra.mxu0 0.0
    %1742 = vmatpush.msra.mxu0 %v202
    %1743 = vmatpush.msra.mxu0 %v201
    %1744 = vmatpush.msra.mxu0 %v200
    %1745 = vmatpush.msra.mxu0 %v199
    %1746 = vmatpush.msra.mxu0 %v198
    %1747 = vmatpush.msra.mxu0 %v197
    %1748 = vmatpush.msra.mxu0 %v196
    %1749 = vmatpush.msra.mxu0 %v195
    %1750 = vmatmul.f32.gmra.mxu0 %v1732
    %v1751 = vpop.f32.mrf.mxu0
    %v1752 = vadd.f32 %v209, %v1751
    %1753 = vdwg.mxu0
    %v1754 = vxor.u32 %v1752, 2147483648
    %v1755 = vmul.f32 %v1754, 1.442695
    %v1756 = vpow.pop %v1755
    %v1757 = vadd.f32 %v1756, 1.0
    %v1758 = vrcp.pop %v1757
    %v1759 = vmul.f32 %v1757, %v1758
    %v1760 = vsub.f32 1.0, %v1759
    %v1761 = vmul.f32 %v1758, %v1760
    %v1762 = vadd.f32 %v1758, %v1761
    %vm1763 = vweird.f32 %v1757
    %vm1764 = vweird.f32 %v1758
    %vm1765 = vmor %vm1763, %vm1764
    %v1766 = vsel %vm1765, %v1758, %v1762
    %v1767 = vand.u32 2147483647, %v1757
    %vm1768 = vcmp.eq.f32.partialorder %v1767, 8.507059e+37
    %v1769 = vand.u32 %v1757, 2147483648
    %v1770 = vor.u32 1.1754944e-38, %v1769
    %v1771 = vsel %vm1768, %v1770, %v1766
    %v1772 = vmul.f32 1.0, %v1771
    %v1773 = vtanh.pop %v1752
    %v1774 = vmul.f32 %v1772, %v1586
    %1776 = vrot.lane.b32.xlu0 %v1773, 32
    %v1777 = vpop.permute.xlu0 %1776
    %v1779 = vmul.f32 %v1772, %v1777
    %1781 = vrot.lane.b32.xlu0 %v1779, 32
    %v1782 = vpop.permute.xlu0 %1781
    %v1784 = vadd.f32 %v1774, %v1782
    %v1785 = vtanh.pop %v1784
    %1787 = vrot.lane.b32.xlu0 %v1785, 32
    %v1788 = vpop.permute.xlu0 %1787
    %v1790 = vmul.f32 %v1772, %v1788
    %v1791 = vld [vmem:[%s8] sm:$0xff]
    %v1792 = vld [vmem:[%s8 + $0x8] sm:$0xff]
    %v1793 = vld [vmem:[%s8 + $0x10] sm:$0xff]
    %v1794 = vld [vmem:[%s8 + $0x18] sm:$0xff]
    %v1795 = vld [vmem:[%s9] sm:$0x1]
    %v1797 = vperm.slane %v1795, 0
    %1800 = vrot.lane.b32.xlu0 %v1790, 64
    %v1801 = vpop.permute.xlu0 %1800
    %v1802 = vsel %vm212, %v1801, 0
    %1804 = vmatpush.msra.mxu0 0.0
    %1805 = vmatpush.msra.mxu0 0.0
    %1806 = vmatpush.msra.mxu0 0.0
    %1807 = vmatpush.msra.mxu0 0.0
    %1808 = vmatpush.msra.mxu0 0.0
    %1809 = vmatpush.msra.mxu0 0.0
    %1810 = vmatpush.msra.mxu0 0.0
    %1811 = vmatpush.msra.mxu0 0.0
    %1812 = vmatpush.msra.mxu0 0.0
    %1813 = vmatpush.msra.mxu0 0.0
    %1814 = vmatpush.msra.mxu0 0.0
    %1815 = vmatpush.msra.mxu0 0.0
    %1816 = vmatpush.msra.mxu0 %v1794
    %1817 = vmatpush.msra.mxu0 %v1793
    %1818 = vmatpush.msra.mxu0 %v1792
    %1819 = vmatpush.msra.mxu0 %v1791
    %1820 = vmatmul.f32.gmra.mxu0 %v1802
    %v1821 = vpop.f32.mrf.mxu0
    %v1822 = vadd.f32 %v1797, %v1821
    %1823 = vdwg.mxu0
    %vm1824 = vcmask 31744
    %1825 = vst.msk [vmem:[%s10] sm:$0xff] %vm1824, %v1822
    // Predicated region
    $region58: #{tpu_custom_call.1} parent=1 // pred_check
      _
    $region59: #{tpu_custom_call.1} parent=1 // pred_check_branch
      %1827 = sbr.rel (0) target = $region61
    $region60: #{tpu_custom_call.1} parent=1 // pred_region
      _
    $region61: #{tpu_custom_call.1} parent=1 // pred_fallthru
      _
    // Predicated region
    $region62: #{tpu_custom_call.1} parent=1 // pred_check
      _
    $region63: #{tpu_custom_call.1} parent=1 // pred_check_branch
      %1829 = sbr.rel (0) target = $region65
    $region64: #{tpu_custom_call.1} parent=1 // pred_region
      _
    $region65: #{tpu_custom_call.1} parent=1 // pred_fallthru
      _
    %1830 = vsyncpa [#allocation4], 1
    %1831 = vsyncpa [#allocation6], 1
    %1832 = vsyncpa [#allocation9], 1

</llo_original>
